<compile_context>
chip_gen: v6e
topology: v6e:2x2x1
jax: 0.10.0
libtpu: 0.0.40
codegen_flags: <defaults>
</compile_context>

<pallas_src>
import math

import numpy as np
import jax
import jax.numpy as jnp
from jax import lax
from jax.experimental import pallas as pl
from jax.experimental.pallas import tpu as pltpu

# ---- problem configuration (small, consistent with the module) --------------
EMB_DIM = 32                      # C
NUM_HEADS = 4                     # H
HEAD_DIM = EMB_DIM // NUM_HEADS   # d = 8
BATCH = 2                         # B
T1 = 8                            # query sequence length
T2 = 8                            # key / value sequence length (== T1 here)
ROWS = BATCH * T1                 # batch folded into rows = 16
IS_CAUSAL = True
NEG_INF = -1e30


def _mha_kernel(x1_ref, x2_ref, x3_ref, wq_ref, wk_ref, wv_ref, wc_ref,
                bias_ref, o_ref):
    """Single invocation; the whole batch-folded problem lives in VMEM.

    x1/x2/x3_ref : (ROWS, C)      batch folded into rows
    wq_ref       : (C, C)         Wq^T * 1/sqrt(d)   (scale folded at init)
    wk_ref       : (C, C)         Wk^T
    wv_ref       : (C, C)         Wv^T
    wc_ref       : (C, C)         Wc^T
    bias_ref     : (ROWS, ROWS)   0 / -1e30 additive mask
                                  (cross-batch block mask + causal, built once)
    o_ref        : (ROWS, C)
    """
    # q/k/v projections: three tiny MXU pushes (cheaper than a wrapper concat
    # + fused block-diagonal weight, which cost an extra XLA launch per call).
    q = jnp.dot(x1_ref[...], wq_ref[...], preferred_element_type=jnp.float32)
    k = jnp.dot(x2_ref[...], wk_ref[...], preferred_element_type=jnp.float32)
    v = jnp.dot(x3_ref[...], wv_ref[...], preferred_element_type=jnp.float32)

    bias = bias_ref[...]                                    # (16, 16)

    acc = jnp.zeros((ROWS, EMB_DIM), jnp.float32)
    for h in range(NUM_HEADS):                              # static, unrolled
        lo = h * HEAD_DIM
        hi = lo + HEAD_DIM
        q_h = q[:, lo:hi]                                   # (16, d)
        k_h = k[:, lo:hi]
        v_h = v[:, lo:hi]

        # Both batches in one score matmul; cross-batch & future entries are
        # killed by the precomputed additive bias.  Softmax scale is already
        # folded into Wq.
        s = lax.dot_general(q_h, k_h, (((1,), (1,)), ((), ())),
                            preferred_element_type=jnp.float32)   # (16, 16)
        s = s + bias

        # numerically-stable softmax over keys; normalization deferred to the
        # (16, d) head output (fewer multiplies, off the MXU-input path).
        m = jnp.max(s, axis=-1, keepdims=True)
        p = jnp.exp(s - m)
        denom = jnp.sum(p, axis=-1, keepdims=True)

        o_h = jnp.dot(p, v_h, preferred_element_type=jnp.float32)   # (16, d)
        o_h = o_h / denom                                           # exact

        # Accumulate straight into the c_proj result: no lane-concat of heads,
        # no separate full-width c_proj matmul.
        acc = acc + jnp.dot(o_h, wc_ref[lo:hi, :],
                            preferred_element_type=jnp.float32)     # (16, C)

    o_ref[...] = acc


def prepare_attention_params(wq, wk, wv, wc):
    """One-time (init-time) weight & mask preparation — NOT per-call work."""
    scale = 1.0 / math.sqrt(HEAD_DIM)
    wq_t = jnp.asarray(wq.T * scale, jnp.float32)
    wk_t = jnp.asarray(wk.T, jnp.float32)
    wv_t = jnp.asarray(wv.T, jnp.float32)
    wc_t = jnp.asarray(wc.T, jnp.float32)

    # Additive bias: block-diagonal (keeps batches independent after folding
    # batch into rows) AND top-left causal j <= i (matches torch
    # F.scaled_dot_product_attention(is_causal=True) for equal seq lengths).
    row = np.arange(ROWS)[:, None]
    col = np.arange(ROWS)[None, :]
    same_batch = (row // T1) == (col // T2)
    valid = same_batch & ((col % T2) <= (row % T1)) if IS_CAUSAL else same_batch
    bias = jnp.asarray(np.where(valid, 0.0, NEG_INF), jnp.float32)
    return wq_t, wk_t, wv_t, wc_t, bias


@jax.jit
def multi_head_attention(x1, x2, x3, wq_t, wk_t, wv_t, wc_t, bias):
    """x*: (B, T, C) float32; weights already prepared (transposed/scaled)."""
    B, t1, C = x1.shape
    t2 = x2.shape[1]
    assert (B, t1, t2, C) == (BATCH, T1, T2, EMB_DIM)
    assert t1 == t2  # batch-folded block mask assumes equal seq lengths

    # Fold batch into rows (contiguous reshape — free, no data movement).
    x1f = x1.reshape(ROWS, C)
    x2f = x2.reshape(ROWS, C)
    x3f = x3.reshape(ROWS, C)

    full = lambda shape: pl.BlockSpec(shape, lambda i: (0, 0))

    out = pl.pallas_call(
        _mha_kernel,
        out_shape=jax.ShapeDtypeStruct((ROWS, C), jnp.float32),
        grid=(1,),
        in_specs=[full((ROWS, C)),        # x1   (16, 32)
                  full((ROWS, C)),        # x2
                  full((ROWS, C)),        # x3
                  full((C, C)),           # Wq^T * scale
                  full((C, C)),           # Wk^T
                  full((C, C)),           # Wv^T
                  full((C, C)),           # Wc^T
                  full((ROWS, ROWS))],    # additive mask (16, 16)
        out_specs=full((ROWS, C)),        # out  (16, 32)
        compiler_params=pltpu.CompilerParams(
            dimension_semantics=("arbitrary",)),
    )(x1f, x2f, x3f, wq_t, wk_t, wv_t, wc_t, bias)

    return out.reshape(B, t1, C)


def _reference(x1, x2, x3, wq, wk, wv, wc):
    """Pure-JAX reference matching the PyTorch forward (eval mode)."""
    B, t1, C = x1.shape
    t2 = x2.shape[1]
    q = x1 @ wq.T
    k = x2 @ wk.T
    v = x3 @ wv.T
    q = q.reshape(B, t1, NUM_HEADS, HEAD_DIM).transpose(0, 2, 1, 3)
    k = k.reshape(B, t2, NUM_HEADS, HEAD_DIM).transpose(0, 2, 1, 3)
    v = v.reshape(B, t2, NUM_HEADS, HEAD_DIM).transpose(0, 2, 1, 3)
    s = jnp.einsum("bhqd,bhkd->bhqk", q, k) / math.sqrt(HEAD_DIM)
    if IS_CAUSAL:
        mask = jnp.tril(jnp.ones((t1, t2), dtype=bool))
        s = jnp.where(mask[None, None], s, NEG_INF)
    p = jax.nn.softmax(s, axis=-1)
    y = jnp.einsum("bhqk,bhkd->bhqd", p, v)
    y = y.transpose(0, 2, 1, 3).reshape(B, t1, C)
    return y @ wc.T


if __name__ == "__main__":
    key = jax.random.PRNGKey(0)
    ks = jax.random.split(key, 7)

    # Deterministic init (PyTorch nn.Linear default: U(-1/sqrt(in), 1/sqrt(in)))
    bound = 1.0 / math.sqrt(EMB_DIM)
    wq = jax.random.uniform(ks[0], (EMB_DIM, EMB_DIM), jnp.float32, -bound, bound)
    wk = jax.random.uniform(ks[1], (EMB_DIM, EMB_DIM), jnp.float32, -bound, bound)
    wv = jax.random.uniform(ks[2], (EMB_DIM, EMB_DIM), jnp.float32, -bound, bound)
    wc = jax.random.uniform(ks[3], (EMB_DIM, EMB_DIM), jnp.float32, -bound, bound)

    x1 = jax.random.normal(ks[4], (BATCH, T1, EMB_DIM), jnp.float32)
    x2 = jax.random.normal(ks[5], (BATCH, T2, EMB_DIM), jnp.float32)
    x3 = jax.random.normal(ks[6], (BATCH, T2, EMB_DIM), jnp.float32)

    # One-time parameter preparation (hoisted out of the per-call path).
    wq_t, wk_t, wv_t, wc_t, bias = prepare_attention_params(wq, wk, wv, wc)
    wq_t, wk_t, wv_t, wc_t, bias = jax.block_until_ready(
        (wq_t, wk_t, wv_t, wc_t, bias))

    out = multi_head_attention(x1, x2, x3, wq_t, wk_t, wv_t, wc_t, bias)
    out = jax.block_until_ready(out)

    ref = _reference(x1, x2, x3, wq, wk, wv, wc)
    assert out.shape == (BATCH, T1, EMB_DIM)
    # All-f32 matmuls + exact softmax divide -> tight tolerance.
    assert jnp.max(jnp.abs(out - ref)) < 1e-3, "mismatch vs pure-JAX reference"

    print("KERNEL_OK")
</pallas_src>

<mosaic_0001>
module attributes {stable_mosaic.version = 11 : i64} {
  func.func @_mha_kernel(%arg0: i32, %arg1: memref<16x32xf32, #tpu.memory_space<vmem>>, %arg2: memref<16x32xf32, #tpu.memory_space<vmem>>, %arg3: memref<16x32xf32, #tpu.memory_space<vmem>>, %arg4: memref<32x32xf32, #tpu.memory_space<vmem>>, %arg5: memref<32x32xf32, #tpu.memory_space<vmem>>, %arg6: memref<32x32xf32, #tpu.memory_space<vmem>>, %arg7: memref<32x32xf32, #tpu.memory_space<vmem>>, %arg8: memref<16x16xf32, #tpu.memory_space<vmem>>, %arg9: memref<16x32xf32, #tpu.memory_space<vmem>>) attributes {dimension_semantics = [#tpu.dimension_semantics<arbitrary>], iteration_bounds = array<i64: 1>, scalar_prefetch = 0 : i64, scratch_operands = 0 : i64, tpu.core_type = #tpu.core_type<tc>, window_params = [{pipeline_mode = #tpu.pipeline_mode<synchronous>, transform_indices = @transform_0, window_bounds = array<i64: 16, 32>}, {pipeline_mode = #tpu.pipeline_mode<synchronous>, transform_indices = @transform_1, window_bounds = array<i64: 16, 32>}, {pipeline_mode = #tpu.pipeline_mode<synchronous>, transform_indices = @transform_2, window_bounds = array<i64: 16, 32>}, {pipeline_mode = #tpu.pipeline_mode<synchronous>, transform_indices = @transform_3, window_bounds = array<i64: 32, 32>}, {pipeline_mode = #tpu.pipeline_mode<synchronous>, transform_indices = @transform_4, window_bounds = array<i64: 32, 32>}, {pipeline_mode = #tpu.pipeline_mode<synchronous>, transform_indices = @transform_5, window_bounds = array<i64: 32, 32>}, {pipeline_mode = #tpu.pipeline_mode<synchronous>, transform_indices = @transform_6, window_bounds = array<i64: 32, 32>}, {pipeline_mode = #tpu.pipeline_mode<synchronous>, transform_indices = @transform_7, window_bounds = array<i64: 16, 16>}, {pipeline_mode = #tpu.pipeline_mode<synchronous>, transform_indices = @transform_8, window_bounds = array<i64: 16, 32>}]} {
    %c0 = arith.constant 0 : index
    %c0_0 = arith.constant 0 : index
    %0 = vector.load %arg1[%c0, %c0_0] : memref<16x32xf32, #tpu.memory_space<vmem>>, vector<16x32xf32>
    %c0_1 = arith.constant 0 : index
    %c0_2 = arith.constant 0 : index
    %1 = vector.load %arg4[%c0_1, %c0_2] : memref<32x32xf32, #tpu.memory_space<vmem>>, vector<32x32xf32>
    %cst = arith.constant dense<0.000000e+00> : vector<16x32xf32>
    %2 = tpu.matmul %0, %1, %cst {dimension_numbers = #tpu.dot_dimension_numbers<[1], [0], [0], [1], [0, 0, 1, 1], [], []>} : vector<16x32xf32>, vector<32x32xf32>, vector<16x32xf32> -> vector<16x32xf32>
    %c0_3 = arith.constant 0 : index
    %c0_4 = arith.constant 0 : index
    %3 = vector.load %arg2[%c0_3, %c0_4] : memref<16x32xf32, #tpu.memory_space<vmem>>, vector<16x32xf32>
    %c0_5 = arith.constant 0 : index
    %c0_6 = arith.constant 0 : index
    %4 = vector.load %arg5[%c0_5, %c0_6] : memref<32x32xf32, #tpu.memory_space<vmem>>, vector<32x32xf32>
    %cst_7 = arith.constant dense<0.000000e+00> : vector<16x32xf32>
    %5 = tpu.matmul %3, %4, %cst_7 {dimension_numbers = #tpu.dot_dimension_numbers<[1], [0], [0], [1], [0, 0, 1, 1], [], []>} : vector<16x32xf32>, vector<32x32xf32>, vector<16x32xf32> -> vector<16x32xf32>
    %c0_8 = arith.constant 0 : index
    %c0_9 = arith.constant 0 : index
    %6 = vector.load %arg3[%c0_8, %c0_9] : memref<16x32xf32, #tpu.memory_space<vmem>>, vector<16x32xf32>
    %c0_10 = arith.constant 0 : index
    %c0_11 = arith.constant 0 : index
    %7 = vector.load %arg6[%c0_10, %c0_11] : memref<32x32xf32, #tpu.memory_space<vmem>>, vector<32x32xf32>
    %cst_12 = arith.constant dense<0.000000e+00> : vector<16x32xf32>
    %8 = tpu.matmul %6, %7, %cst_12 {dimension_numbers = #tpu.dot_dimension_numbers<[1], [0], [0], [1], [0, 0, 1, 1], [], []>} : vector<16x32xf32>, vector<32x32xf32>, vector<16x32xf32> -> vector<16x32xf32>
    %c0_13 = arith.constant 0 : index
    %c0_14 = arith.constant 0 : index
    %9 = vector.load %arg8[%c0_13, %c0_14] : memref<16x16xf32, #tpu.memory_space<vmem>>, vector<16x16xf32>
    %cst_15 = arith.constant 0.000000e+00 : f32
    %10 = vector.broadcast %cst_15 : f32 to vector<16x32xf32>
    %11 = vector.extract_strided_slice %2 {offsets = [0, 0], sizes = [16, 8], strides = [1, 1]} : vector<16x32xf32> to vector<16x8xf32>
    %12 = vector.extract_strided_slice %5 {offsets = [0, 0], sizes = [16, 8], strides = [1, 1]} : vector<16x32xf32> to vector<16x8xf32>
    %13 = vector.extract_strided_slice %8 {offsets = [0, 0], sizes = [16, 8], strides = [1, 1]} : vector<16x32xf32> to vector<16x8xf32>
    %cst_16 = arith.constant dense<0.000000e+00> : vector<16x16xf32>
    %14 = tpu.matmul %11, %12, %cst_16 {dimension_numbers = #tpu.dot_dimension_numbers<[1], [1], [0], [0], [0, 0, 1, 0], [], []>} : vector<16x8xf32>, vector<16x8xf32>, vector<16x16xf32> -> vector<16x16xf32>
    %15 = arith.addf %14, %9 : vector<16x16xf32>
    %cst_17 = arith.constant dense<0xFF800000> : vector<16xf32>
    %16 = vector.multi_reduction <maximumf>, %15, %cst_17 [1] : vector<16x16xf32> to vector<16xf32>
    %17 = vector.shape_cast %16 : vector<16xf32> to vector<16x1xf32>
    %18 = vector.broadcast %17 : vector<16x1xf32> to vector<16x16xf32>
    %19 = arith.subf %15, %18 : vector<16x16xf32>
    %20 = math.exp %19 : vector<16x16xf32>
    %cst_18 = arith.constant dense<0.000000e+00> : vector<16xf32>
    %21 = vector.multi_reduction <add>, %20, %cst_18 [1] : vector<16x16xf32> to vector<16xf32>
    %22 = vector.shape_cast %21 : vector<16xf32> to vector<16x1xf32>
    %cst_19 = arith.constant dense<0.000000e+00> : vector<16x8xf32>
    %23 = tpu.matmul %20, %13, %cst_19 {dimension_numbers = #tpu.dot_dimension_numbers<[1], [0], [0], [1], [0, 0, 1, 1], [], []>} : vector<16x16xf32>, vector<16x8xf32>, vector<16x8xf32> -> vector<16x8xf32>
    %24 = vector.broadcast %22 : vector<16x1xf32> to vector<16x8xf32>
    %25 = arith.divf %23, %24 : vector<16x8xf32>
    %c0_20 = arith.constant 0 : index
    %c0_21 = arith.constant 0 : index
    %26 = vector.load %arg7[%c0_20, %c0_21] : memref<32x32xf32, #tpu.memory_space<vmem>>, vector<8x32xf32>
    %cst_22 = arith.constant dense<0.000000e+00> : vector<16x32xf32>
    %27 = tpu.matmul %25, %26, %cst_22 {dimension_numbers = #tpu.dot_dimension_numbers<[1], [0], [0], [1], [0, 0, 1, 1], [], []>} : vector<16x8xf32>, vector<8x32xf32>, vector<16x32xf32> -> vector<16x32xf32>
    %28 = arith.addf %10, %27 : vector<16x32xf32>
    %29 = vector.extract_strided_slice %2 {offsets = [0, 8], sizes = [16, 8], strides = [1, 1]} : vector<16x32xf32> to vector<16x8xf32>
    %30 = vector.extract_strided_slice %5 {offsets = [0, 8], sizes = [16, 8], strides = [1, 1]} : vector<16x32xf32> to vector<16x8xf32>
    %31 = vector.extract_strided_slice %8 {offsets = [0, 8], sizes = [16, 8], strides = [1, 1]} : vector<16x32xf32> to vector<16x8xf32>
    %cst_23 = arith.constant dense<0.000000e+00> : vector<16x16xf32>
    %32 = tpu.matmul %29, %30, %cst_23 {dimension_numbers = #tpu.dot_dimension_numbers<[1], [1], [0], [0], [0, 0, 1, 0], [], []>} : vector<16x8xf32>, vector<16x8xf32>, vector<16x16xf32> -> vector<16x16xf32>
    %33 = arith.addf %32, %9 : vector<16x16xf32>
    %cst_24 = arith.constant dense<0xFF800000> : vector<16xf32>
    %34 = vector.multi_reduction <maximumf>, %33, %cst_24 [1] : vector<16x16xf32> to vector<16xf32>
    %35 = vector.shape_cast %34 : vector<16xf32> to vector<16x1xf32>
    %36 = vector.broadcast %35 : vector<16x1xf32> to vector<16x16xf32>
    %37 = arith.subf %33, %36 : vector<16x16xf32>
    %38 = math.exp %37 : vector<16x16xf32>
    %cst_25 = arith.constant dense<0.000000e+00> : vector<16xf32>
    %39 = vector.multi_reduction <add>, %38, %cst_25 [1] : vector<16x16xf32> to vector<16xf32>
    %40 = vector.shape_cast %39 : vector<16xf32> to vector<16x1xf32>
    %cst_26 = arith.constant dense<0.000000e+00> : vector<16x8xf32>
    %41 = tpu.matmul %38, %31, %cst_26 {dimension_numbers = #tpu.dot_dimension_numbers<[1], [0], [0], [1], [0, 0, 1, 1], [], []>} : vector<16x16xf32>, vector<16x8xf32>, vector<16x8xf32> -> vector<16x8xf32>
    %42 = vector.broadcast %40 : vector<16x1xf32> to vector<16x8xf32>
    %43 = arith.divf %41, %42 : vector<16x8xf32>
    %c8 = arith.constant 8 : index
    %c0_27 = arith.constant 0 : index
    %44 = vector.load %arg7[%c8, %c0_27] : memref<32x32xf32, #tpu.memory_space<vmem>>, vector<8x32xf32>
    %cst_28 = arith.constant dense<0.000000e+00> : vector<16x32xf32>
    %45 = tpu.matmul %43, %44, %cst_28 {dimension_numbers = #tpu.dot_dimension_numbers<[1], [0], [0], [1], [0, 0, 1, 1], [], []>} : vector<16x8xf32>, vector<8x32xf32>, vector<16x32xf32> -> vector<16x32xf32>
    %46 = arith.addf %28, %45 : vector<16x32xf32>
    %47 = vector.extract_strided_slice %2 {offsets = [0, 16], sizes = [16, 8], strides = [1, 1]} : vector<16x32xf32> to vector<16x8xf32>
    %48 = vector.extract_strided_slice %5 {offsets = [0, 16], sizes = [16, 8], strides = [1, 1]} : vector<16x32xf32> to vector<16x8xf32>
    %49 = vector.extract_strided_slice %8 {offsets = [0, 16], sizes = [16, 8], strides = [1, 1]} : vector<16x32xf32> to vector<16x8xf32>
    %cst_29 = arith.constant dense<0.000000e+00> : vector<16x16xf32>
    %50 = tpu.matmul %47, %48, %cst_29 {dimension_numbers = #tpu.dot_dimension_numbers<[1], [1], [0], [0], [0, 0, 1, 0], [], []>} : vector<16x8xf32>, vector<16x8xf32>, vector<16x16xf32> -> vector<16x16xf32>
    %51 = arith.addf %50, %9 : vector<16x16xf32>
    %cst_30 = arith.constant dense<0xFF800000> : vector<16xf32>
    %52 = vector.multi_reduction <maximumf>, %51, %cst_30 [1] : vector<16x16xf32> to vector<16xf32>
    %53 = vector.shape_cast %52 : vector<16xf32> to vector<16x1xf32>
    %54 = vector.broadcast %53 : vector<16x1xf32> to vector<16x16xf32>
    %55 = arith.subf %51, %54 : vector<16x16xf32>
    %56 = math.exp %55 : vector<16x16xf32>
    %cst_31 = arith.constant dense<0.000000e+00> : vector<16xf32>
    %57 = vector.multi_reduction <add>, %56, %cst_31 [1] : vector<16x16xf32> to vector<16xf32>
    %58 = vector.shape_cast %57 : vector<16xf32> to vector<16x1xf32>
    %cst_32 = arith.constant dense<0.000000e+00> : vector<16x8xf32>
    %59 = tpu.matmul %56, %49, %cst_32 {dimension_numbers = #tpu.dot_dimension_numbers<[1], [0], [0], [1], [0, 0, 1, 1], [], []>} : vector<16x16xf32>, vector<16x8xf32>, vector<16x8xf32> -> vector<16x8xf32>
    %60 = vector.broadcast %58 : vector<16x1xf32> to vector<16x8xf32>
    %61 = arith.divf %59, %60 : vector<16x8xf32>
    %c16 = arith.constant 16 : index
    %c0_33 = arith.constant 0 : index
    %62 = vector.load %arg7[%c16, %c0_33] : memref<32x32xf32, #tpu.memory_space<vmem>>, vector<8x32xf32>
    %cst_34 = arith.constant dense<0.000000e+00> : vector<16x32xf32>
    %63 = tpu.matmul %61, %62, %cst_34 {dimension_numbers = #tpu.dot_dimension_numbers<[1], [0], [0], [1], [0, 0, 1, 1], [], []>} : vector<16x8xf32>, vector<8x32xf32>, vector<16x32xf32> -> vector<16x32xf32>
    %64 = arith.addf %46, %63 : vector<16x32xf32>
    %65 = vector.extract_strided_slice %2 {offsets = [0, 24], sizes = [16, 8], strides = [1, 1]} : vector<16x32xf32> to vector<16x8xf32>
    %66 = vector.extract_strided_slice %5 {offsets = [0, 24], sizes = [16, 8], strides = [1, 1]} : vector<16x32xf32> to vector<16x8xf32>
    %67 = vector.extract_strided_slice %8 {offsets = [0, 24], sizes = [16, 8], strides = [1, 1]} : vector<16x32xf32> to vector<16x8xf32>
    %cst_35 = arith.constant dense<0.000000e+00> : vector<16x16xf32>
    %68 = tpu.matmul %65, %66, %cst_35 {dimension_numbers = #tpu.dot_dimension_numbers<[1], [1], [0], [0], [0, 0, 1, 0], [], []>} : vector<16x8xf32>, vector<16x8xf32>, vector<16x16xf32> -> vector<16x16xf32>
    %69 = arith.addf %68, %9 : vector<16x16xf32>
    %cst_36 = arith.constant dense<0xFF800000> : vector<16xf32>
    %70 = vector.multi_reduction <maximumf>, %69, %cst_36 [1] : vector<16x16xf32> to vector<16xf32>
    %71 = vector.shape_cast %70 : vector<16xf32> to vector<16x1xf32>
    %72 = vector.broadcast %71 : vector<16x1xf32> to vector<16x16xf32>
    %73 = arith.subf %69, %72 : vector<16x16xf32>
    %74 = math.exp %73 : vector<16x16xf32>
    %cst_37 = arith.constant dense<0.000000e+00> : vector<16xf32>
    %75 = vector.multi_reduction <add>, %74, %cst_37 [1] : vector<16x16xf32> to vector<16xf32>
    %76 = vector.shape_cast %75 : vector<16xf32> to vector<16x1xf32>
    %cst_38 = arith.constant dense<0.000000e+00> : vector<16x8xf32>
    %77 = tpu.matmul %74, %67, %cst_38 {dimension_numbers = #tpu.dot_dimension_numbers<[1], [0], [0], [1], [0, 0, 1, 1], [], []>} : vector<16x16xf32>, vector<16x8xf32>, vector<16x8xf32> -> vector<16x8xf32>
    %78 = vector.broadcast %76 : vector<16x1xf32> to vector<16x8xf32>
    %79 = arith.divf %77, %78 : vector<16x8xf32>
    %c24 = arith.constant 24 : index
    %c0_39 = arith.constant 0 : index
    %80 = vector.load %arg7[%c24, %c0_39] : memref<32x32xf32, #tpu.memory_space<vmem>>, vector<8x32xf32>
    %cst_40 = arith.constant dense<0.000000e+00> : vector<16x32xf32>
    %81 = tpu.matmul %79, %80, %cst_40 {dimension_numbers = #tpu.dot_dimension_numbers<[1], [0], [0], [1], [0, 0, 1, 1], [], []>} : vector<16x8xf32>, vector<8x32xf32>, vector<16x32xf32> -> vector<16x32xf32>
    %82 = arith.addf %64, %81 : vector<16x32xf32>
    %c0_41 = arith.constant 0 : index
    %c0_42 = arith.constant 0 : index
    %83 = vector.load %arg9[%c0_41, %c0_42] : memref<16x32xf32, #tpu.memory_space<vmem>>, vector<16x32xf32>
    tpu.vector_store %arg9[%c0_41, %c0_42], %82 {strides = array<i32>} : memref<16x32xf32, #tpu.memory_space<vmem>>, vector<16x32xf32>,
    return
  }
  func.func @transform_0(%arg0: i32) -> (i32, i32) {
    %c0_i32 = arith.constant 0 : i32
    %c0_i32_0 = arith.constant 0 : i32
    %c0_i32_1 = arith.constant 0 : i32
    return %c0_i32, %c0_i32_0 : i32, i32
  }
  func.func @transform_1(%arg0: i32) -> (i32, i32) {
    %c0_i32 = arith.constant 0 : i32
    %c0_i32_0 = arith.constant 0 : i32
    %c0_i32_1 = arith.constant 0 : i32
    return %c0_i32, %c0_i32_0 : i32, i32
  }
  func.func @transform_2(%arg0: i32) -> (i32, i32) {
    %c0_i32 = arith.constant 0 : i32
    %c0_i32_0 = arith.constant 0 : i32
    %c0_i32_1 = arith.constant 0 : i32
    return %c0_i32, %c0_i32_0 : i32, i32
  }
  func.func @transform_3(%arg0: i32) -> (i32, i32) {
    %c0_i32 = arith.constant 0 : i32
    %c0_i32_0 = arith.constant 0 : i32
    %c0_i32_1 = arith.constant 0 : i32
    return %c0_i32, %c0_i32_0 : i32, i32
  }
  func.func @transform_4(%arg0: i32) -> (i32, i32) {
    %c0_i32 = arith.constant 0 : i32
    %c0_i32_0 = arith.constant 0 : i32
    %c0_i32_1 = arith.constant 0 : i32
    return %c0_i32, %c0_i32_0 : i32, i32
  }
  func.func @transform_5(%arg0: i32) -> (i32, i32) {
    %c0_i32 = arith.constant 0 : i32
    %c0_i32_0 = arith.constant 0 : i32
    %c0_i32_1 = arith.constant 0 : i32
    return %c0_i32, %c0_i32_0 : i32, i32
  }
  func.func @transform_6(%arg0: i32) -> (i32, i32) {
    %c0_i32 = arith.constant 0 : i32
    %c0_i32_0 = arith.constant 0 : i32
    %c0_i32_1 = arith.constant 0 : i32
    return %c0_i32, %c0_i32_0 : i32, i32
  }
  func.func @transform_7(%arg0: i32) -> (i32, i32) {
    %c0_i32 = arith.constant 0 : i32
    %c0_i32_0 = arith.constant 0 : i32
    %c0_i32_1 = arith.constant 0 : i32
    return %c0_i32, %c0_i32_0 : i32, i32
  }
  func.func @transform_8(%arg0: i32) -> (i32, i32) {
    %c0_i32 = arith.constant 0 : i32
    %c0_i32_0 = arith.constant 0 : i32
    %c0_i32_1 = arith.constant 0 : i32
    return %c0_i32, %c0_i32_0 : i32, i32
  }
}

</mosaic_0001>

<llo_original>
// kernel: multi_head_attention.1
$region0: #{multi_head_attention.1}
  #allocation0 [shape = 'u32[]', space=smem, size = 0x4, offset = 0x4, fixed_abs, tag = 'smem constant byte address 0x4 - core index']
  #allocation1 [shape = 'u32[144,128]{1,0:T(1,128)}', space=vmem, size = 0x12000, scoped, tag = 'internal scratch']
  %s0 = inlined_call_operand.hbm [shape: f32[16,32], index: 0, kind: input, shape index: {}]
  %s1 = inlined_call_operand.hbm [shape: f32[16,32], index: 1, kind: input, shape index: {}]
  %s2 = inlined_call_operand.hbm [shape: f32[16,32], index: 2, kind: input, shape index: {}]
  %s3 = inlined_call_operand.hbm [shape: f32[32,32], index: 3, kind: input, shape index: {}]
  %s4 = inlined_call_operand.hbm [shape: f32[32,32], index: 4, kind: input, shape index: {}]
  %s5 = inlined_call_operand.hbm [shape: f32[32,32], index: 5, kind: input, shape index: {}]
  %s6 = inlined_call_operand.hbm [shape: f32[32,32], index: 6, kind: input, shape index: {}]
  %s7 = inlined_call_operand.vmem [shape: f32[16,16], index: 7, kind: input, shape index: {}]
  %s8 = inlined_call_operand.hbm [shape: f32[16,32], index: 8, kind: output, shape index: {}]
  %s9 = sld [smem:[#allocation0]]
  $region70: #{multi_head_attention.1} parent=0
    _
  %s11 = ssub.s32 1, %s9
  %s12 = scalar_select 0, %s11, %s9
  $region1: #{multi_head_attention.1} parent=0
    #allocation2 [shape = 'u8[8192]{0}', space=vmem, size = 0x2000, scoped, tag = 'input window, operand 0, single buffered']
    #allocation3 [shape = 's32[1]{0}', space=sflag, size = 0x4, scoped, tag = 'scoped memory for multi_head_attention.1']
    #allocation4 [shape = 's32[1]{0}', space=sflag, size = 0x4, scoped, tag = 'scoped memory for multi_head_attention.1']
    #allocation5 [shape = 'u8[8192]{0}', space=vmem, size = 0x2000, scoped, tag = 'input window, operand 1, single buffered']
    #allocation6 [shape = 's32[1]{0}', space=sflag, size = 0x4, scoped, tag = 'scoped memory for multi_head_attention.1']
    #allocation7 [shape = 'u8[8192]{0}', space=vmem, size = 0x2000, scoped, tag = 'input window, operand 2, single buffered']
    #allocation8 [shape = 'u8[16384]{0}', space=vmem, size = 0x4000, scoped, tag = 'input window, operand 3, single buffered']
    #allocation9 [shape = 's32[1]{0}', space=sflag, size = 0x4, scoped, tag = 'scoped memory for multi_head_attention.1']
    #allocation10 [shape = 'u8[16384]{0}', space=vmem, size = 0x4000, scoped, tag = 'input window, operand 4, single buffered']
    #allocation11 [shape = 'u8[16384]{0}', space=vmem, size = 0x4000, scoped, tag = 'input window, operand 5, single buffered']
    #allocation12 [shape = 's32[1]{0}', space=sflag, size = 0x4, scoped, tag = 'scoped memory for multi_head_attention.1']
    #allocation13 [shape = 'u8[16384]{0}', space=vmem, size = 0x4000, scoped, tag = 'input window, operand 6, single buffered']
    #allocation14 [shape = 'u8[8192]{0}', space=vmem, size = 0x2000, scoped, tag = 'output window, operand 0, single buffered']
    %13 = vsyncpa [#allocation3], 0
    %14 = vsyncpa [#allocation6], 0
    %15 = vsyncpa [#allocation9], 0
    %16 = vsyncpa [#allocation12], 0
    %17 = vsyncpa [#allocation4], 0
    // Predicated region
    $region2: #{multi_head_attention.1} parent=1 // pred_check
      _
    $region3: #{multi_head_attention.1} parent=1 // pred_check_branch
      %19 = sbr.rel (0) target = $region5
    $region4: #{multi_head_attention.1} parent=1 // pred_region
      %s21 = ssub.s32 256, 256
      %22 = vsyncadd [#allocation3], %s21
      %s23 = sshll.u32 [#allocation2], 4
      %s24 = int_to_ptr.vmem [resolvable:$true] %s23
      %29 = dma.hbm_to_vmem [thread:$0]  %s0, 256, %s24, [#allocation3], 128, 128, 8
    $region5: #{multi_head_attention.1} parent=1 // pred_fallthru
      _
    // Predicated region
    $region6: #{multi_head_attention.1} parent=1 // pred_check
      _
    $region7: #{multi_head_attention.1} parent=1 // pred_check_branch
      %31 = sbr.rel (0) target = $region9
    $region8: #{multi_head_attention.1} parent=1 // pred_region
      %s33 = ssub.s32 256, 256
      %34 = vsyncadd [#allocation6], %s33
      %s35 = sshll.u32 [#allocation5], 4
      %s36 = int_to_ptr.vmem [resolvable:$true] %s35
      %41 = dma.hbm_to_vmem [thread:$0]  %s1, 256, %s36, [#allocation6], 128, 128, 8
    $region9: #{multi_head_attention.1} parent=1 // pred_fallthru
      _
    // Predicated region
    $region10: #{multi_head_attention.1} parent=1 // pred_check
      _
    $region11: #{multi_head_attention.1} parent=1 // pred_check_branch
      %43 = sbr.rel (0) target = $region13
    $region12: #{multi_head_attention.1} parent=1 // pred_region
      %s45 = ssub.s32 256, 256
      %46 = vsyncadd [#allocation6], %s45
      %s47 = sshll.u32 [#allocation7], 4
      %s48 = int_to_ptr.vmem [resolvable:$true] %s47
      %53 = dma.hbm_to_vmem [thread:$0]  %s2, 256, %s48, [#allocation6], 128, 128, 8
    $region13: #{multi_head_attention.1} parent=1 // pred_fallthru
      _
    // Predicated region
    $region14: #{multi_head_attention.1} parent=1 // pred_check
      _
    $region15: #{multi_head_attention.1} parent=1 // pred_check_branch
      %55 = sbr.rel (0) target = $region17
    $region16: #{multi_head_attention.1} parent=1 // pred_region
      %s57 = ssub.s32 512, 512
      %58 = vsyncadd [#allocation9], %s57
      %s59 = sshll.u32 [#allocation8], 4
      %s60 = int_to_ptr.vmem [resolvable:$true] %s59
      %65 = dma.hbm_to_vmem [thread:$0]  %s3, 512, %s60, [#allocation9], 128, 128, 8
    $region17: #{multi_head_attention.1} parent=1 // pred_fallthru
      _
    // Predicated region
    $region18: #{multi_head_attention.1} parent=1 // pred_check
      _
    $region19: #{multi_head_attention.1} parent=1 // pred_check_branch
      %67 = sbr.rel (0) target = $region21
    $region20: #{multi_head_attention.1} parent=1 // pred_region
      %s69 = ssub.s32 512, 512
      %70 = vsyncadd [#allocation9], %s69
      %s71 = sshll.u32 [#allocation10], 4
      %s72 = int_to_ptr.vmem [resolvable:$true] %s71
      %77 = dma.hbm_to_vmem [thread:$0]  %s4, 512, %s72, [#allocation9], 128, 128, 8
    $region21: #{multi_head_attention.1} parent=1 // pred_fallthru
      _
    // Predicated region
    $region22: #{multi_head_attention.1} parent=1 // pred_check
      _
    $region23: #{multi_head_attention.1} parent=1 // pred_check_branch
      %79 = sbr.rel (0) target = $region25
    $region24: #{multi_head_attention.1} parent=1 // pred_region
      %s81 = ssub.s32 512, 512
      %82 = vsyncadd [#allocation12], %s81
      %s83 = sshll.u32 [#allocation11], 4
      %s84 = int_to_ptr.vmem [resolvable:$true] %s83
      %89 = dma.hbm_to_vmem [thread:$0]  %s5, 512, %s84, [#allocation12], 128, 128, 8
    $region25: #{multi_head_attention.1} parent=1 // pred_fallthru
      _
    // Predicated region
    $region26: #{multi_head_attention.1} parent=1 // pred_check
      _
    $region27: #{multi_head_attention.1} parent=1 // pred_check_branch
      %91 = sbr.rel (0) target = $region29
    $region28: #{multi_head_attention.1} parent=1 // pred_region
      %s93 = ssub.s32 512, 512
      %94 = vsyncadd [#allocation12], %s93
      %s95 = sshll.u32 [#allocation13], 4
      %s96 = int_to_ptr.vmem [resolvable:$true] %s95
      %101 = dma.hbm_to_vmem [thread:$0]  %s6, 512, %s96, [#allocation12], 128, 128, 8
    $region29: #{multi_head_attention.1} parent=1 // pred_fallthru
      _
    // Predicated region
    $region30: #{multi_head_attention.1} parent=1 // pred_check
      _
    $region31: #{multi_head_attention.1} parent=1 // pred_check_branch
      %103 = sbr.rel (0) target = $region33
    $region32: #{multi_head_attention.1} parent=1 // pred_region
      _
    $region33: #{multi_head_attention.1} parent=1 // pred_fallthru
      _
    // Predicated region
    $region34: #{multi_head_attention.1} parent=1 // pred_check
      _
    $region35: #{multi_head_attention.1} parent=1 // pred_check_branch
      %105 = sbr.rel (0) target = $region37
    $region36: #{multi_head_attention.1} parent=1 // pred_region
      %106 = dma.done [#allocation3], 256
    $region37: #{multi_head_attention.1} parent=1 // pred_fallthru
      _
    // Predicated region
    $region38: #{multi_head_attention.1} parent=1 // pred_check
      _
    $region39: #{multi_head_attention.1} parent=1 // pred_check_branch
      %108 = sbr.rel (0) target = $region41
    $region40: #{multi_head_attention.1} parent=1 // pred_region
      %109 = dma.done [#allocation6], 256
    $region41: #{multi_head_attention.1} parent=1 // pred_fallthru
      _
    // Predicated region
    $region42: #{multi_head_attention.1} parent=1 // pred_check
      _
    $region43: #{multi_head_attention.1} parent=1 // pred_check_branch
      %111 = sbr.rel (0) target = $region45
    $region44: #{multi_head_attention.1} parent=1 // pred_region
      %112 = dma.done [#allocation6], 256
    $region45: #{multi_head_attention.1} parent=1 // pred_fallthru
      _
    // Predicated region
    $region46: #{multi_head_attention.1} parent=1 // pred_check
      _
    $region47: #{multi_head_attention.1} parent=1 // pred_check_branch
      %114 = sbr.rel (0) target = $region49
    $region48: #{multi_head_attention.1} parent=1 // pred_region
      %115 = dma.done [#allocation9], 512
    $region49: #{multi_head_attention.1} parent=1 // pred_fallthru
      _
    // Predicated region
    $region50: #{multi_head_attention.1} parent=1 // pred_check
      _
    $region51: #{multi_head_attention.1} parent=1 // pred_check_branch
      %117 = sbr.rel (0) target = $region53
    $region52: #{multi_head_attention.1} parent=1 // pred_region
      %118 = dma.done [#allocation9], 512
    $region53: #{multi_head_attention.1} parent=1 // pred_fallthru
      _
    // Predicated region
    $region54: #{multi_head_attention.1} parent=1 // pred_check
      _
    $region55: #{multi_head_attention.1} parent=1 // pred_check_branch
      %120 = sbr.rel (0) target = $region57
    $region56: #{multi_head_attention.1} parent=1 // pred_region
      %121 = dma.done [#allocation12], 512
    $region57: #{multi_head_attention.1} parent=1 // pred_fallthru
      _
    // Predicated region
    $region58: #{multi_head_attention.1} parent=1 // pred_check
      _
    $region59: #{multi_head_attention.1} parent=1 // pred_check_branch
      %123 = sbr.rel (0) target = $region61
    $region60: #{multi_head_attention.1} parent=1 // pred_region
      %124 = dma.done [#allocation12], 512
    $region61: #{multi_head_attention.1} parent=1 // pred_fallthru
      _
    %v125 = vld [vmem:[#allocation2] sm:$0xff]
    %v126 = vld [vmem:[#allocation2 + $0x8] sm:$0xff]
    %v127 = vld [vmem:[#allocation8] sm:$0xff]
    %v128 = vld [vmem:[#allocation8 + $0x8] sm:$0xff]
    %v129 = vld [vmem:[#allocation8 + $0x10] sm:$0xff]
    %v130 = vld [vmem:[#allocation8 + $0x18] sm:$0xff]
    %vm131 = vcmask 261120
    %v133 = vsel %vm131, %v125, 0
    %v136 = vsel %vm131, %v126, 0
    %138 = vmatprep.subr.mxu0 0.0
    %139 = vmatpush1.msra.mxu0 0.0
    %140 = vmatprep.subr.mxu0 0.0
    %141 = vmatpush1.msra.mxu0 0.0
    %142 = vmatprep.subr.mxu0 0.0
    %143 = vmatpush1.msra.mxu0 0.0
    %144 = vmatprep.subr.mxu0 0.0
    %145 = vmatpush1.msra.mxu0 0.0
    %146 = vmatprep.subr.mxu0 0.0
    %147 = vmatpush1.msra.mxu0 0.0
    %148 = vmatprep.subr.mxu0 0.0
    %149 = vmatpush1.msra.mxu0 0.0
    %150 = vmatprep.subr.mxu0 0.0
    %151 = vmatpush1.msra.mxu0 0.0
    %152 = vmatprep.subr.mxu0 0.0
    %153 = vmatpush1.msra.mxu0 0.0
    %154 = vmatprep.subr.mxu0 0.0
    %155 = vmatpush1.msra.mxu0 0.0
    %156 = vmatprep.subr.mxu0 0.0
    %157 = vmatpush1.msra.mxu0 0.0
    %158 = vmatprep.subr.mxu0 0.0
    %159 = vmatpush1.msra.mxu0 0.0
    %160 = vmatprep.subr.mxu0 0.0
    %161 = vmatpush1.msra.mxu0 0.0
    %162 = vmatprep.subr.mxu0 0.0
    %163 = vmatpush1.msra.mxu0 %v130
    %164 = vmatprep.subr.mxu0 0.0
    %165 = vmatpush1.msra.mxu0 %v129
    %166 = vmatprep.subr.mxu0 0.0
    %167 = vmatpush1.msra.mxu0 %v128
    %168 = vmatprep.subr.mxu0 0.0
    %169 = vmatpush1.msra.mxu0 %v127
    %170 = vmatprep.subr.mxu0 0.0
    %171 = vmatpush2.msra.mxu0 0.0
    %172 = vmatprep.subr.mxu0 0.0
    %173 = vmatpush2.msra.mxu0 0.0
    %174 = vmatprep.subr.mxu0 0.0
    %175 = vmatpush2.msra.mxu0 0.0
    %176 = vmatprep.subr.mxu0 0.0
    %177 = vmatpush2.msra.mxu0 0.0
    %178 = vmatprep.subr.mxu0 0.0
    %179 = vmatpush2.msra.mxu0 0.0
    %180 = vmatprep.subr.mxu0 0.0
    %181 = vmatpush2.msra.mxu0 0.0
    %182 = vmatprep.subr.mxu0 0.0
    %183 = vmatpush2.msra.mxu0 0.0
    %184 = vmatprep.subr.mxu0 0.0
    %185 = vmatpush2.msra.mxu0 0.0
    %186 = vmatprep.subr.mxu0 0.0
    %187 = vmatpush2.msra.mxu0 0.0
    %188 = vmatprep.subr.mxu0 0.0
    %189 = vmatpush2.msra.mxu0 0.0
    %190 = vmatprep.subr.mxu0 0.0
    %191 = vmatpush2.msra.mxu0 0.0
    %192 = vmatprep.subr.mxu0 0.0
    %193 = vmatpush2.msra.mxu0 0.0
    %194 = vmatprep.subr.mxu0 0.0
    %195 = vmatpush2.msra.mxu0 0.0
    %196 = vmatprep.subr.mxu0 0.0
    %197 = vmatpush2.msra.mxu0 0.0
    %198 = vmatprep.subr.mxu0 0.0
    %199 = vmatpush2.msra.mxu0 0.0
    %200 = vmatprep.subr.mxu0 0.0
    %201 = vmatpush2.msra.mxu0 0.0
    %202 = vmatprep.mubr.f32.mxu0 0.0
    %203 = vmatmul.mubr.f32.gmra.mxu0 %v133
    %v204 = vpop.f32.mrf.mxu0
    %v205 = vadd.f32 0.0, %v204
    %v206 = vpop.f32.mrf.mxu0
    %207 = vmatprep.mubr.f32.mxu0 0.0
    %208 = vmatmul.mubr.f32.gmra.mxu0 %v136
    %v209 = vpop.f32.mrf.mxu0
    %v210 = vadd.f32 0.0, %v209
    %v211 = vpop.f32.mrf.mxu0
    %212 = vdwg.mxu0
    %v213 = vld [vmem:[#allocation5] sm:$0xff]
    %v214 = vld [vmem:[#allocation5 + $0x8] sm:$0xff]
    %v215 = vld [vmem:[#allocation10] sm:$0xff]
    %v216 = vld [vmem:[#allocation10 + $0x8] sm:$0xff]
    %v217 = vld [vmem:[#allocation10 + $0x10] sm:$0xff]
    %v218 = vld [vmem:[#allocation10 + $0x18] sm:$0xff]
    %v220 = vsel %vm131, %v213, 0
    %v223 = vsel %vm131, %v214, 0
    %225 = vmatprep.subr.mxu0 0.0
    %226 = vmatpush1.msra.mxu0 0.0
    %227 = vmatprep.subr.mxu0 0.0
    %228 = vmatpush1.msra.mxu0 0.0
    %229 = vmatprep.subr.mxu0 0.0
    %230 = vmatpush1.msra.mxu0 0.0
    %231 = vmatprep.subr.mxu0 0.0
    %232 = vmatpush1.msra.mxu0 0.0
    %233 = vmatprep.subr.mxu0 0.0
    %234 = vmatpush1.msra.mxu0 0.0
    %235 = vmatprep.subr.mxu0 0.0
    %236 = vmatpush1.msra.mxu0 0.0
    %237 = vmatprep.subr.mxu0 0.0
    %238 = vmatpush1.msra.mxu0 0.0
    %239 = vmatprep.subr.mxu0 0.0
    %240 = vmatpush1.msra.mxu0 0.0
    %241 = vmatprep.subr.mxu0 0.0
    %242 = vmatpush1.msra.mxu0 0.0
    %243 = vmatprep.subr.mxu0 0.0
    %244 = vmatpush1.msra.mxu0 0.0
    %245 = vmatprep.subr.mxu0 0.0
    %246 = vmatpush1.msra.mxu0 0.0
    %247 = vmatprep.subr.mxu0 0.0
    %248 = vmatpush1.msra.mxu0 0.0
    %249 = vmatprep.subr.mxu0 0.0
    %250 = vmatpush1.msra.mxu0 %v218
    %251 = vmatprep.subr.mxu0 0.0
    %252 = vmatpush1.msra.mxu0 %v217
    %253 = vmatprep.subr.mxu0 0.0
    %254 = vmatpush1.msra.mxu0 %v216
    %255 = vmatprep.subr.mxu0 0.0
    %256 = vmatpush1.msra.mxu0 %v215
    %257 = vmatprep.subr.mxu0 0.0
    %258 = vmatpush2.msra.mxu0 0.0
    %259 = vmatprep.subr.mxu0 0.0
    %260 = vmatpush2.msra.mxu0 0.0
    %261 = vmatprep.subr.mxu0 0.0
    %262 = vmatpush2.msra.mxu0 0.0
    %263 = vmatprep.subr.mxu0 0.0
    %264 = vmatpush2.msra.mxu0 0.0
    %265 = vmatprep.subr.mxu0 0.0
    %266 = vmatpush2.msra.mxu0 0.0
    %267 = vmatprep.subr.mxu0 0.0
    %268 = vmatpush2.msra.mxu0 0.0
    %269 = vmatprep.subr.mxu0 0.0
    %270 = vmatpush2.msra.mxu0 0.0
    %271 = vmatprep.subr.mxu0 0.0
    %272 = vmatpush2.msra.mxu0 0.0
    %273 = vmatprep.subr.mxu0 0.0
    %274 = vmatpush2.msra.mxu0 0.0
    %275 = vmatprep.subr.mxu0 0.0
    %276 = vmatpush2.msra.mxu0 0.0
    %277 = vmatprep.subr.mxu0 0.0
    %278 = vmatpush2.msra.mxu0 0.0
    %279 = vmatprep.subr.mxu0 0.0
    %280 = vmatpush2.msra.mxu0 0.0
    %281 = vmatprep.subr.mxu0 0.0
    %282 = vmatpush2.msra.mxu0 0.0
    %283 = vmatprep.subr.mxu0 0.0
    %284 = vmatpush2.msra.mxu0 0.0
    %285 = vmatprep.subr.mxu0 0.0
    %286 = vmatpush2.msra.mxu0 0.0
    %287 = vmatprep.subr.mxu0 0.0
    %288 = vmatpush2.msra.mxu0 0.0
    %289 = vmatprep.mubr.f32.mxu0 0.0
    %290 = vmatmul.mubr.f32.gmra.mxu0 %v220
    %v291 = vpop.f32.mrf.mxu0
    %v292 = vadd.f32 0.0, %v291
    %v293 = vpop.f32.mrf.mxu0
    %294 = vmatprep.mubr.f32.mxu0 0.0
    %295 = vmatmul.mubr.f32.gmra.mxu0 %v223
    %v296 = vpop.f32.mrf.mxu0
    %v297 = vadd.f32 0.0, %v296
    %v298 = vpop.f32.mrf.mxu0
    %299 = vdwg.mxu0
    %v300 = vld [vmem:[#allocation7] sm:$0xff]
    %v301 = vld [vmem:[#allocation7 + $0x8] sm:$0xff]
    %v302 = vld [vmem:[#allocation11] sm:$0xff]
    %v303 = vld [vmem:[#allocation11 + $0x8] sm:$0xff]
    %v304 = vld [vmem:[#allocation11 + $0x10] sm:$0xff]
    %v305 = vld [vmem:[#allocation11 + $0x18] sm:$0xff]
    %v307 = vsel %vm131, %v300, 0
    %v310 = vsel %vm131, %v301, 0
    %312 = vmatprep.subr.mxu0 0.0
    %313 = vmatpush1.msra.mxu0 0.0
    %314 = vmatprep.subr.mxu0 0.0
    %315 = vmatpush1.msra.mxu0 0.0
    %316 = vmatprep.subr.mxu0 0.0
    %317 = vmatpush1.msra.mxu0 0.0
    %318 = vmatprep.subr.mxu0 0.0
    %319 = vmatpush1.msra.mxu0 0.0
    %320 = vmatprep.subr.mxu0 0.0
    %321 = vmatpush1.msra.mxu0 0.0
    %322 = vmatprep.subr.mxu0 0.0
    %323 = vmatpush1.msra.mxu0 0.0
    %324 = vmatprep.subr.mxu0 0.0
    %325 = vmatpush1.msra.mxu0 0.0
    %326 = vmatprep.subr.mxu0 0.0
    %327 = vmatpush1.msra.mxu0 0.0
    %328 = vmatprep.subr.mxu0 0.0
    %329 = vmatpush1.msra.mxu0 0.0
    %330 = vmatprep.subr.mxu0 0.0
    %331 = vmatpush1.msra.mxu0 0.0
    %332 = vmatprep.subr.mxu0 0.0
    %333 = vmatpush1.msra.mxu0 0.0
    %334 = vmatprep.subr.mxu0 0.0
    %335 = vmatpush1.msra.mxu0 0.0
    %336 = vmatprep.subr.mxu0 0.0
    %337 = vmatpush1.msra.mxu0 %v305
    %338 = vmatprep.subr.mxu0 0.0
    %339 = vmatpush1.msra.mxu0 %v304
    %340 = vmatprep.subr.mxu0 0.0
    %341 = vmatpush1.msra.mxu0 %v303
    %342 = vmatprep.subr.mxu0 0.0
    %343 = vmatpush1.msra.mxu0 %v302
    %344 = vmatprep.subr.mxu0 0.0
    %345 = vmatpush2.msra.mxu0 0.0
    %346 = vmatprep.subr.mxu0 0.0
    %347 = vmatpush2.msra.mxu0 0.0
    %348 = vmatprep.subr.mxu0 0.0
    %349 = vmatpush2.msra.mxu0 0.0
    %350 = vmatprep.subr.mxu0 0.0
    %351 = vmatpush2.msra.mxu0 0.0
    %352 = vmatprep.subr.mxu0 0.0
    %353 = vmatpush2.msra.mxu0 0.0
    %354 = vmatprep.subr.mxu0 0.0
    %355 = vmatpush2.msra.mxu0 0.0
    %356 = vmatprep.subr.mxu0 0.0
    %357 = vmatpush2.msra.mxu0 0.0
    %358 = vmatprep.subr.mxu0 0.0
    %359 = vmatpush2.msra.mxu0 0.0
    %360 = vmatprep.subr.mxu0 0.0
    %361 = vmatpush2.msra.mxu0 0.0
    %362 = vmatprep.subr.mxu0 0.0
    %363 = vmatpush2.msra.mxu0 0.0
    %364 = vmatprep.subr.mxu0 0.0
    %365 = vmatpush2.msra.mxu0 0.0
    %366 = vmatprep.subr.mxu0 0.0
    %367 = vmatpush2.msra.mxu0 0.0
    %368 = vmatprep.subr.mxu0 0.0
    %369 = vmatpush2.msra.mxu0 0.0
    %370 = vmatprep.subr.mxu0 0.0
    %371 = vmatpush2.msra.mxu0 0.0
    %372 = vmatprep.subr.mxu0 0.0
    %373 = vmatpush2.msra.mxu0 0.0
    %374 = vmatprep.subr.mxu0 0.0
    %375 = vmatpush2.msra.mxu0 0.0
    %376 = vmatprep.mubr.f32.mxu0 0.0
    %377 = vmatmul.mubr.f32.gmra.mxu0 %v307
    %v378 = vpop.f32.mrf.mxu0
    %v379 = vadd.f32 0.0, %v378
    %v380 = vpop.f32.mrf.mxu0
    %381 = vmatprep.mubr.f32.mxu0 0.0
    %382 = vmatmul.mubr.f32.gmra.mxu0 %v310
    %v383 = vpop.f32.mrf.mxu0
    %v384 = vadd.f32 0.0, %v383
    %v385 = vpop.f32.mrf.mxu0
    %386 = vdwg.mxu0
    %v387 = vld [vmem:[%s7] sm:$0xff]
    %v388 = vld [vmem:[%s7 + $0x8] sm:$0xff]
    %vm389 = vcmask 64512
    %v391 = vsel %vm389, %v205, 0
    %v394 = vsel %vm389, %v210, 0
    %v397 = vsel %vm389, %v292, 0
    %v400 = vsel %vm389, %v297, 0
    %402 = vmatprep.subr.mxu0 0.0
    %403 = vmatpush1.xpose.msra.mxu0 0.0
    %404 = vmatprep.subr.mxu0 0.0
    %405 = vmatpush1.xpose.msra.mxu0 0.0
    %406 = vmatprep.subr.mxu0 0.0
    %407 = vmatpush1.xpose.msra.mxu0 0.0
    %408 = vmatprep.subr.mxu0 0.0
    %409 = vmatpush1.xpose.msra.mxu0 0.0
    %410 = vmatprep.subr.mxu0 0.0
    %411 = vmatpush1.xpose.msra.mxu0 0.0
    %412 = vmatprep.subr.mxu0 0.0
    %413 = vmatpush1.xpose.msra.mxu0 0.0
    %414 = vmatprep.subr.mxu0 0.0
    %415 = vmatpush1.xpose.msra.mxu0 0.0
    %416 = vmatprep.subr.mxu0 0.0
    %417 = vmatpush1.xpose.msra.mxu0 0.0
    %418 = vmatprep.subr.mxu0 0.0
    %419 = vmatpush1.xpose.msra.mxu0 0.0
    %420 = vmatprep.subr.mxu0 0.0
    %421 = vmatpush1.xpose.msra.mxu0 0.0
    %422 = vmatprep.subr.mxu0 0.0
    %423 = vmatpush1.xpose.msra.mxu0 0.0
    %424 = vmatprep.subr.mxu0 0.0
    %425 = vmatpush1.xpose.msra.mxu0 0.0
    %426 = vmatprep.subr.mxu0 0.0
    %427 = vmatpush1.xpose.msra.mxu0 0.0
    %428 = vmatprep.subr.mxu0 0.0
    %429 = vmatpush1.xpose.msra.mxu0 0.0
    %430 = vmatprep.subr.mxu0 0.0
    %431 = vmatpush1.xpose.msra.mxu0 %v400
    %432 = vmatprep.subr.mxu0 0.0
    %433 = vmatpush1.xpose.msra.mxu0 %v397
    %434 = vmatprep.subr.mxu0 0.0
    %435 = vmatpush2.xpose.msra.mxu0 0.0
    %436 = vmatprep.subr.mxu0 0.0
    %437 = vmatpush2.xpose.msra.mxu0 0.0
    %438 = vmatprep.subr.mxu0 0.0
    %439 = vmatpush2.xpose.msra.mxu0 0.0
    %440 = vmatprep.subr.mxu0 0.0
    %441 = vmatpush2.xpose.msra.mxu0 0.0
    %442 = vmatprep.subr.mxu0 0.0
    %443 = vmatpush2.xpose.msra.mxu0 0.0
    %444 = vmatprep.subr.mxu0 0.0
    %445 = vmatpush2.xpose.msra.mxu0 0.0
    %446 = vmatprep.subr.mxu0 0.0
    %447 = vmatpush2.xpose.msra.mxu0 0.0
    %448 = vmatprep.subr.mxu0 0.0
    %449 = vmatpush2.xpose.msra.mxu0 0.0
    %450 = vmatprep.subr.mxu0 0.0
    %451 = vmatpush2.xpose.msra.mxu0 0.0
    %452 = vmatprep.subr.mxu0 0.0
    %453 = vmatpush2.xpose.msra.mxu0 0.0
    %454 = vmatprep.subr.mxu0 0.0
    %455 = vmatpush2.xpose.msra.mxu0 0.0
    %456 = vmatprep.subr.mxu0 0.0
    %457 = vmatpush2.xpose.msra.mxu0 0.0
    %458 = vmatprep.subr.mxu0 0.0
    %459 = vmatpush2.xpose.msra.mxu0 0.0
    %460 = vmatprep.subr.mxu0 0.0
    %461 = vmatpush2.xpose.msra.mxu0 0.0
    %462 = vmatprep.subr.mxu0 0.0
    %463 = vmatpush2.xpose.msra.mxu0 0.0
    %464 = vmatprep.subr.mxu0 0.0
    %465 = vmatpush2.xpose.msra.mxu0 0.0
    %466 = vmatprep.mubr.f32.mxu0 0.0
    %467 = vmatmul.mubr.f32.gmra.mxu0 %v391
    %v468 = vpop.f32.mrf.mxu0
    %v469 = vadd.f32 %v387, %v468
    %v470 = vpop.f32.mrf.mxu0
    %471 = vmatprep.mubr.f32.mxu0 0.0
    %472 = vmatmul.mubr.f32.gmra.mxu0 %v394
    %v473 = vpop.f32.mrf.mxu0
    %v474 = vadd.f32 %v388, %v473
    %v475 = vpop.f32.mrf.mxu0
    %476 = vdwg.mxu0
    %vm477 = vcmask 130048
    %v478 = vsel %vm477, %v469, -inf
    %479 = vmax.xlane.f32.xlu0 %v478
    %v480 = vpop.xlane.xlu0 %479
    %v481 = vsel %vm477, %v474, -inf
    %482 = vmax.xlane.f32.xlu0 %v481
    %v483 = vpop.xlane.xlu0 %482
    %v484 = vsub.f32 %v469, %v480
    %v485 = vsub.f32 %v474, %v483
    %v486 = vmul.f32 %v484, 1.442695
    %v487 = vpow.pop %v486
    %v488 = vmul.f32 %v485, 1.442695
    %v489 = vpow.pop %v488
    %v490 = vsel %vm477, %v487, 0.0
    %491 = vadd.xlane.f32.xlu0 %v490
    %v492 = vpop.xlane.xlu0 %491
    %v493 = vsel %vm477, %v489, 0.0
    %494 = vadd.xlane.f32.xlu0 %v493
    %v495 = vpop.xlane.xlu0 %494
    %v497 = vsel %vm477, %v487, 0
    %v500 = vsel %vm477, %v489, 0
    %502 = vmatprep.subr.mxu0 0.0
    %503 = vmatpush1.msra.mxu0 0.0
    %504 = vmatprep.subr.mxu0 0.0
    %505 = vmatpush1.msra.mxu0 0.0
    %506 = vmatprep.subr.mxu0 0.0
    %507 = vmatpush1.msra.mxu0 0.0
    %508 = vmatprep.subr.mxu0 0.0
    %509 = vmatpush1.msra.mxu0 0.0
    %510 = vmatprep.subr.mxu0 0.0
    %511 = vmatpush1.msra.mxu0 0.0
    %512 = vmatprep.subr.mxu0 0.0
    %513 = vmatpush1.msra.mxu0 0.0
    %514 = vmatprep.subr.mxu0 0.0
    %515 = vmatpush1.msra.mxu0 0.0
    %516 = vmatprep.subr.mxu0 0.0
    %517 = vmatpush1.msra.mxu0 0.0
    %518 = vmatprep.subr.mxu0 0.0
    %519 = vmatpush1.msra.mxu0 0.0
    %520 = vmatprep.subr.mxu0 0.0
    %521 = vmatpush1.msra.mxu0 0.0
    %522 = vmatprep.subr.mxu0 0.0
    %523 = vmatpush1.msra.mxu0 0.0
    %524 = vmatprep.subr.mxu0 0.0
    %525 = vmatpush1.msra.mxu0 0.0
    %526 = vmatprep.subr.mxu0 0.0
    %527 = vmatpush1.msra.mxu0 0.0
    %528 = vmatprep.subr.mxu0 0.0
    %529 = vmatpush1.msra.mxu0 0.0
    %530 = vmatprep.subr.mxu0 0.0
    %531 = vmatpush1.msra.mxu0 %v384
    %532 = vmatprep.subr.mxu0 0.0
    %533 = vmatpush1.msra.mxu0 %v379
    %534 = vmatprep.subr.mxu0 0.0
    %535 = vmatpush2.msra.mxu0 0.0
    %536 = vmatprep.subr.mxu0 0.0
    %537 = vmatpush2.msra.mxu0 0.0
    %538 = vmatprep.subr.mxu0 0.0
    %539 = vmatpush2.msra.mxu0 0.0
    %540 = vmatprep.subr.mxu0 0.0
    %541 = vmatpush2.msra.mxu0 0.0
    %542 = vmatprep.subr.mxu0 0.0
    %543 = vmatpush2.msra.mxu0 0.0
    %544 = vmatprep.subr.mxu0 0.0
    %545 = vmatpush2.msra.mxu0 0.0
    %546 = vmatprep.subr.mxu0 0.0
    %547 = vmatpush2.msra.mxu0 0.0
    %548 = vmatprep.subr.mxu0 0.0
    %549 = vmatpush2.msra.mxu0 0.0
    %550 = vmatprep.subr.mxu0 0.0
    %551 = vmatpush2.msra.mxu0 0.0
    %552 = vmatprep.subr.mxu0 0.0
    %553 = vmatpush2.msra.mxu0 0.0
    %554 = vmatprep.subr.mxu0 0.0
    %555 = vmatpush2.msra.mxu0 0.0
    %556 = vmatprep.subr.mxu0 0.0
    %557 = vmatpush2.msra.mxu0 0.0
    %558 = vmatprep.subr.mxu0 0.0
    %559 = vmatpush2.msra.mxu0 0.0
    %560 = vmatprep.subr.mxu0 0.0
    %561 = vmatpush2.msra.mxu0 0.0
    %562 = vmatprep.subr.mxu0 0.0
    %563 = vmatpush2.msra.mxu0 0.0
    %564 = vmatprep.subr.mxu0 0.0
    %565 = vmatpush2.msra.mxu0 0.0
    %566 = vmatprep.mubr.f32.mxu0 0.0
    %567 = vmatmul.mubr.f32.gmra.mxu0 %v497
    %v568 = vpop.f32.mrf.mxu0
    %v569 = vadd.f32 0.0, %v568
    %v570 = vpop.f32.mrf.mxu0
    %571 = vmatprep.mubr.f32.mxu0 0.0
    %572 = vmatmul.mubr.f32.gmra.mxu0 %v500
    %v573 = vpop.f32.mrf.mxu0
    %v574 = vadd.f32 0.0, %v573
    %v575 = vpop.f32.mrf.mxu0
    %576 = vdwg.mxu0
    %v577 = vrcp.pop %v492
    %v578 = vmul.f32 %v569, %v577
    %v579 = vrcp.pop %v495
    %v580 = vmul.f32 %v574, %v579
    %v581 = vld [vmem:[#allocation13] sm:$0xff]
    %582 = vrot.lane.b32.xlu0 %v205, 120
    %v583 = vpop.permute.xlu0 %582
    %584 = vrot.lane.b32.xlu0 %v210, 120
    %v585 = vpop.permute.xlu0 %584
    %586 = vrot.lane.b32.xlu0 %v292, 120
    %v587 = vpop.permute.xlu0 %586
    %588 = vrot.lane.b32.xlu0 %v297, 120
    %v589 = vpop.permute.xlu0 %588
    %v590 = vsel %vm389, %v583, 0
    %v592 = vsel %vm389, %v585, 0
    %v594 = vsel %vm389, %v587, 0
    %v596 = vsel %vm389, %v589, 0
    %598 = vmatprep.subr.mxu0 0.0
    %599 = vmatpush1.xpose.msra.mxu0 0.0
    %600 = vmatprep.subr.mxu0 0.0
    %601 = vmatpush1.xpose.msra.mxu0 0.0
    %602 = vmatprep.subr.mxu0 0.0
    %603 = vmatpush1.xpose.msra.mxu0 0.0
    %604 = vmatprep.subr.mxu0 0.0
    %605 = vmatpush1.xpose.msra.mxu0 0.0
    %606 = vmatprep.subr.mxu0 0.0
    %607 = vmatpush1.xpose.msra.mxu0 0.0
    %608 = vmatprep.subr.mxu0 0.0
    %609 = vmatpush1.xpose.msra.mxu0 0.0
    %610 = vmatprep.subr.mxu0 0.0
    %611 = vmatpush1.xpose.msra.mxu0 0.0
    %612 = vmatprep.subr.mxu0 0.0
    %613 = vmatpush1.xpose.msra.mxu0 0.0
    %614 = vmatprep.subr.mxu0 0.0
    %615 = vmatpush1.xpose.msra.mxu0 0.0
    %616 = vmatprep.subr.mxu0 0.0
    %617 = vmatpush1.xpose.msra.mxu0 0.0
    %618 = vmatprep.subr.mxu0 0.0
    %619 = vmatpush1.xpose.msra.mxu0 0.0
    %620 = vmatprep.subr.mxu0 0.0
    %621 = vmatpush1.xpose.msra.mxu0 0.0
    %622 = vmatprep.subr.mxu0 0.0
    %623 = vmatpush1.xpose.msra.mxu0 0.0
    %624 = vmatprep.subr.mxu0 0.0
    %625 = vmatpush1.xpose.msra.mxu0 0.0
    %626 = vmatprep.subr.mxu0 0.0
    %627 = vmatpush1.xpose.msra.mxu0 %v596
    %628 = vmatprep.subr.mxu0 0.0
    %629 = vmatpush1.xpose.msra.mxu0 %v594
    %630 = vmatprep.subr.mxu0 0.0
    %631 = vmatpush2.xpose.msra.mxu0 0.0
    %632 = vmatprep.subr.mxu0 0.0
    %633 = vmatpush2.xpose.msra.mxu0 0.0
    %634 = vmatprep.subr.mxu0 0.0
    %635 = vmatpush2.xpose.msra.mxu0 0.0
    %636 = vmatprep.subr.mxu0 0.0
    %637 = vmatpush2.xpose.msra.mxu0 0.0
    %638 = vmatprep.subr.mxu0 0.0
    %639 = vmatpush2.xpose.msra.mxu0 0.0
    %640 = vmatprep.subr.mxu0 0.0
    %641 = vmatpush2.xpose.msra.mxu0 0.0
    %642 = vmatprep.subr.mxu0 0.0
    %643 = vmatpush2.xpose.msra.mxu0 0.0
    %644 = vmatprep.subr.mxu0 0.0
    %645 = vmatpush2.xpose.msra.mxu0 0.0
    %646 = vmatprep.subr.mxu0 0.0
    %647 = vmatpush2.xpose.msra.mxu0 0.0
    %648 = vmatprep.subr.mxu0 0.0
    %649 = vmatpush2.xpose.msra.mxu0 0.0
    %650 = vmatprep.subr.mxu0 0.0
    %651 = vmatpush2.xpose.msra.mxu0 0.0
    %652 = vmatprep.subr.mxu0 0.0
    %653 = vmatpush2.xpose.msra.mxu0 0.0
    %654 = vmatprep.subr.mxu0 0.0
    %655 = vmatpush2.xpose.msra.mxu0 0.0
    %656 = vmatprep.subr.mxu0 0.0
    %657 = vmatpush2.xpose.msra.mxu0 0.0
    %658 = vmatprep.subr.mxu0 0.0
    %659 = vmatpush2.xpose.msra.mxu0 0.0
    %660 = vmatprep.subr.mxu0 0.0
    %661 = vmatpush2.xpose.msra.mxu0 0.0
    %662 = vmatprep.mubr.f32.mxu0 0.0
    %663 = vmatmul.mubr.f32.gmra.mxu0 %v590
    %v664 = vpop.f32.mrf.mxu0
    %v665 = vadd.f32 %v387, %v664
    %v666 = vpop.f32.mrf.mxu0
    %667 = vmatprep.mubr.f32.mxu0 0.0
    %668 = vmatmul.mubr.f32.gmra.mxu0 %v592
    %v669 = vpop.f32.mrf.mxu0
    %v670 = vadd.f32 %v388, %v669
    %v671 = vpop.f32.mrf.mxu0
    %672 = vdwg.mxu0
    %v673 = vsel %vm477, %v665, -inf
    %674 = vmax.xlane.f32.xlu0 %v673
    %v675 = vpop.xlane.xlu0 %674
    %v676 = vsel %vm477, %v670, -inf
    %677 = vmax.xlane.f32.xlu0 %v676
    %v678 = vpop.xlane.xlu0 %677
    %v679 = vsub.f32 %v665, %v675
    %v680 = vsub.f32 %v670, %v678
    %v681 = vmul.f32 %v679, 1.442695
    %v682 = vpow.pop %v681
    %v683 = vmul.f32 %v680, 1.442695
    %v684 = vpow.pop %v683
    %v685 = vsel %vm477, %v682, 0.0
    %686 = vadd.xlane.f32.xlu0 %v685
    %v687 = vpop.xlane.xlu0 %686
    %v688 = vsel %vm477, %v684, 0.0
    %689 = vadd.xlane.f32.xlu0 %v688
    %v690 = vpop.xlane.xlu0 %689
    %693 = vrot.lane.b32.xlu0 %v379, 120
    %v694 = vpop.permute.xlu0 %693
    %695 = vrot.lane.b32.xlu0 %v384, 120
    %v696 = vpop.permute.xlu0 %695
    %v700 = vsel %vm477, %v682, 0
    %v703 = vsel %vm477, %v684, 0
    %705 = vmatprep.subr.mxu0 0.0
    %706 = vmatpush1.msra.mxu0 0.0
    %707 = vmatprep.subr.mxu0 0.0
    %708 = vmatpush1.msra.mxu0 0.0
    %709 = vmatprep.subr.mxu0 0.0
    %710 = vmatpush1.msra.mxu0 0.0
    %711 = vmatprep.subr.mxu0 0.0
    %712 = vmatpush1.msra.mxu0 0.0
    %713 = vmatprep.subr.mxu0 0.0
    %714 = vmatpush1.msra.mxu0 0.0
    %715 = vmatprep.subr.mxu0 0.0
    %716 = vmatpush1.msra.mxu0 0.0
    %717 = vmatprep.subr.mxu0 0.0
    %718 = vmatpush1.msra.mxu0 0.0
    %719 = vmatprep.subr.mxu0 0.0
    %720 = vmatpush1.msra.mxu0 0.0
    %721 = vmatprep.subr.mxu0 0.0
    %722 = vmatpush1.msra.mxu0 0.0
    %723 = vmatprep.subr.mxu0 0.0
    %724 = vmatpush1.msra.mxu0 0.0
    %725 = vmatprep.subr.mxu0 0.0
    %726 = vmatpush1.msra.mxu0 0.0
    %727 = vmatprep.subr.mxu0 0.0
    %728 = vmatpush1.msra.mxu0 0.0
    %729 = vmatprep.subr.mxu0 0.0
    %730 = vmatpush1.msra.mxu0 0.0
    %731 = vmatprep.subr.mxu0 0.0
    %732 = vmatpush1.msra.mxu0 0.0
    %733 = vmatprep.subr.mxu0 0.0
    %734 = vmatpush1.msra.mxu0 %v696
    %735 = vmatprep.subr.mxu0 0.0
    %736 = vmatpush1.msra.mxu0 %v694
    %737 = vmatprep.subr.mxu0 0.0
    %738 = vmatpush2.msra.mxu0 0.0
    %739 = vmatprep.subr.mxu0 0.0
    %740 = vmatpush2.msra.mxu0 0.0
    %741 = vmatprep.subr.mxu0 0.0
    %742 = vmatpush2.msra.mxu0 0.0
    %743 = vmatprep.subr.mxu0 0.0
    %744 = vmatpush2.msra.mxu0 0.0
    %745 = vmatprep.subr.mxu0 0.0
    %746 = vmatpush2.msra.mxu0 0.0
    %747 = vmatprep.subr.mxu0 0.0
    %748 = vmatpush2.msra.mxu0 0.0
    %749 = vmatprep.subr.mxu0 0.0
    %750 = vmatpush2.msra.mxu0 0.0
    %751 = vmatprep.subr.mxu0 0.0
    %752 = vmatpush2.msra.mxu0 0.0
    %753 = vmatprep.subr.mxu0 0.0
    %754 = vmatpush2.msra.mxu0 0.0
    %755 = vmatprep.subr.mxu0 0.0
    %756 = vmatpush2.msra.mxu0 0.0
    %757 = vmatprep.subr.mxu0 0.0
    %758 = vmatpush2.msra.mxu0 0.0
    %759 = vmatprep.subr.mxu0 0.0
    %760 = vmatpush2.msra.mxu0 0.0
    %761 = vmatprep.subr.mxu0 0.0
    %762 = vmatpush2.msra.mxu0 0.0
    %763 = vmatprep.subr.mxu0 0.0
    %764 = vmatpush2.msra.mxu0 0.0
    %765 = vmatprep.subr.mxu0 0.0
    %766 = vmatpush2.msra.mxu0 0.0
    %767 = vmatprep.subr.mxu0 0.0
    %768 = vmatpush2.msra.mxu0 0.0
    %769 = vmatprep.mubr.f32.mxu0 0.0
    %770 = vmatmul.mubr.f32.gmra.mxu0 %v700
    %v771 = vpop.f32.mrf.mxu0
    %v772 = vadd.f32 0.0, %v771
    %v773 = vpop.f32.mrf.mxu0
    %774 = vmatprep.mubr.f32.mxu0 0.0
    %775 = vmatmul.mubr.f32.gmra.mxu0 %v703
    %v776 = vpop.f32.mrf.mxu0
    %v777 = vadd.f32 0.0, %v776
    %v778 = vpop.f32.mrf.mxu0
    %779 = vdwg.mxu0
    %v780 = vrcp.pop %v687
    %v781 = vmul.f32 %v772, %v780
    %v782 = vrcp.pop %v690
    %v783 = vmul.f32 %v777, %v782
    %v784 = vld [vmem:[#allocation13 + $0x8] sm:$0xff]
    %v786 = vsel %vm389, %v781, 0
    %v789 = vsel %vm389, %v783, 0
    %791 = vmatprep.subr.mxu0 0.0
    %792 = vmatpush1.msra.mxu0 0.0
    %793 = vmatprep.subr.mxu0 0.0
    %794 = vmatpush1.msra.mxu0 0.0
    %795 = vmatprep.subr.mxu0 0.0
    %796 = vmatpush1.msra.mxu0 0.0
    %797 = vmatprep.subr.mxu0 0.0
    %798 = vmatpush1.msra.mxu0 0.0
    %799 = vmatprep.subr.mxu0 0.0
    %800 = vmatpush1.msra.mxu0 0.0
    %801 = vmatprep.subr.mxu0 0.0
    %802 = vmatpush1.msra.mxu0 0.0
    %803 = vmatprep.subr.mxu0 0.0
    %804 = vmatpush1.msra.mxu0 0.0
    %805 = vmatprep.subr.mxu0 0.0
    %806 = vmatpush1.msra.mxu0 0.0
    %807 = vmatprep.subr.mxu0 0.0
    %808 = vmatpush1.msra.mxu0 0.0
    %809 = vmatprep.subr.mxu0 0.0
    %810 = vmatpush1.msra.mxu0 0.0
    %811 = vmatprep.subr.mxu0 0.0
    %812 = vmatpush1.msra.mxu0 0.0
    %813 = vmatprep.subr.mxu0 0.0
    %814 = vmatpush1.msra.mxu0 0.0
    %815 = vmatprep.subr.mxu0 0.0
    %816 = vmatpush1.msra.mxu0 0.0
    %817 = vmatprep.subr.mxu0 0.0
    %818 = vmatpush1.msra.mxu0 0.0
    %819 = vmatprep.subr.mxu0 0.0
    %820 = vmatpush1.msra.mxu0 0.0
    %821 = vmatprep.subr.mxu0 0.0
    %822 = vmatpush1.msra.mxu0 %v784
    %823 = vmatprep.subr.mxu0 0.0
    %824 = vmatpush2.msra.mxu0 0.0
    %825 = vmatprep.subr.mxu0 0.0
    %826 = vmatpush2.msra.mxu0 0.0
    %827 = vmatprep.subr.mxu0 0.0
    %828 = vmatpush2.msra.mxu0 0.0
    %829 = vmatprep.subr.mxu0 0.0
    %830 = vmatpush2.msra.mxu0 0.0
    %831 = vmatprep.subr.mxu0 0.0
    %832 = vmatpush2.msra.mxu0 0.0
    %833 = vmatprep.subr.mxu0 0.0
    %834 = vmatpush2.msra.mxu0 0.0
    %835 = vmatprep.subr.mxu0 0.0
    %836 = vmatpush2.msra.mxu0 0.0
    %837 = vmatprep.subr.mxu0 0.0
    %838 = vmatpush2.msra.mxu0 0.0
    %839 = vmatprep.subr.mxu0 0.0
    %840 = vmatpush2.msra.mxu0 0.0
    %841 = vmatprep.subr.mxu0 0.0
    %842 = vmatpush2.msra.mxu0 0.0
    %843 = vmatprep.subr.mxu0 0.0
    %844 = vmatpush2.msra.mxu0 0.0
    %845 = vmatprep.subr.mxu0 0.0
    %846 = vmatpush2.msra.mxu0 0.0
    %847 = vmatprep.subr.mxu0 0.0
    %848 = vmatpush2.msra.mxu0 0.0
    %849 = vmatprep.subr.mxu0 0.0
    %850 = vmatpush2.msra.mxu0 0.0
    %851 = vmatprep.subr.mxu0 0.0
    %852 = vmatpush2.msra.mxu0 0.0
    %853 = vmatprep.subr.mxu0 0.0
    %854 = vmatpush2.msra.mxu0 0.0
    %855 = vmatprep.mubr.f32.mxu0 0.0
    %856 = vmatmul.mubr.f32.gmra.mxu0 %v786
    %v857 = vpop.f32.mrf.mxu0
    %v858 = vadd.f32 0.0, %v857
    %v859 = vpop.f32.mrf.mxu0
    %860 = vmatprep.mubr.f32.mxu0 0.0
    %861 = vmatmul.mubr.f32.gmra.mxu0 %v789
    %v862 = vpop.f32.mrf.mxu0
    %v863 = vadd.f32 0.0, %v862
    %v864 = vpop.f32.mrf.mxu0
    %865 = vdwg.mxu0
    %v867 = vsel %vm389, %v578, 0
    %v870 = vsel %vm389, %v580, 0
    %872 = vmatprep.subr.mxu0 0.0
    %873 = vmatpush1.msra.mxu0 0.0
    %874 = vmatprep.subr.mxu0 0.0
    %875 = vmatpush1.msra.mxu0 0.0
    %876 = vmatprep.subr.mxu0 0.0
    %877 = vmatpush1.msra.mxu0 0.0
    %878 = vmatprep.subr.mxu0 0.0
    %879 = vmatpush1.msra.mxu0 0.0
    %880 = vmatprep.subr.mxu0 0.0
    %881 = vmatpush1.msra.mxu0 0.0
    %882 = vmatprep.subr.mxu0 0.0
    %883 = vmatpush1.msra.mxu0 0.0
    %884 = vmatprep.subr.mxu0 0.0
    %885 = vmatpush1.msra.mxu0 0.0
    %886 = vmatprep.subr.mxu0 0.0
    %887 = vmatpush1.msra.mxu0 0.0
    %888 = vmatprep.subr.mxu0 0.0
    %889 = vmatpush1.msra.mxu0 0.0
    %890 = vmatprep.subr.mxu0 0.0
    %891 = vmatpush1.msra.mxu0 0.0
    %892 = vmatprep.subr.mxu0 0.0
    %893 = vmatpush1.msra.mxu0 0.0
    %894 = vmatprep.subr.mxu0 0.0
    %895 = vmatpush1.msra.mxu0 0.0
    %896 = vmatprep.subr.mxu0 0.0
    %897 = vmatpush1.msra.mxu0 0.0
    %898 = vmatprep.subr.mxu0 0.0
    %899 = vmatpush1.msra.mxu0 0.0
    %900 = vmatprep.subr.mxu0 0.0
    %901 = vmatpush1.msra.mxu0 0.0
    %902 = vmatprep.subr.mxu0 0.0
    %903 = vmatpush1.msra.mxu0 %v581
    %904 = vmatprep.subr.mxu0 0.0
    %905 = vmatpush2.msra.mxu0 0.0
    %906 = vmatprep.subr.mxu0 0.0
    %907 = vmatpush2.msra.mxu0 0.0
    %908 = vmatprep.subr.mxu0 0.0
    %909 = vmatpush2.msra.mxu0 0.0
    %910 = vmatprep.subr.mxu0 0.0
    %911 = vmatpush2.msra.mxu0 0.0
    %912 = vmatprep.subr.mxu0 0.0
    %913 = vmatpush2.msra.mxu0 0.0
    %914 = vmatprep.subr.mxu0 0.0
    %915 = vmatpush2.msra.mxu0 0.0
    %916 = vmatprep.subr.mxu0 0.0
    %917 = vmatpush2.msra.mxu0 0.0
    %918 = vmatprep.subr.mxu0 0.0
    %919 = vmatpush2.msra.mxu0 0.0
    %920 = vmatprep.subr.mxu0 0.0
    %921 = vmatpush2.msra.mxu0 0.0
    %922 = vmatprep.subr.mxu0 0.0
    %923 = vmatpush2.msra.mxu0 0.0
    %924 = vmatprep.subr.mxu0 0.0
    %925 = vmatpush2.msra.mxu0 0.0
    %926 = vmatprep.subr.mxu0 0.0
    %927 = vmatpush2.msra.mxu0 0.0
    %928 = vmatprep.subr.mxu0 0.0
    %929 = vmatpush2.msra.mxu0 0.0
    %930 = vmatprep.subr.mxu0 0.0
    %931 = vmatpush2.msra.mxu0 0.0
    %932 = vmatprep.subr.mxu0 0.0
    %933 = vmatpush2.msra.mxu0 0.0
    %934 = vmatprep.subr.mxu0 0.0
    %935 = vmatpush2.msra.mxu0 0.0
    %936 = vmatprep.mubr.f32.mxu0 0.0
    %937 = vmatmul.mubr.f32.gmra.mxu0 %v867
    %v938 = vpop.f32.mrf.mxu0
    %v939 = vadd.f32 %v858, %v938
    %v940 = vpop.f32.mrf.mxu0
    %941 = vmatprep.mubr.f32.mxu0 0.0
    %942 = vmatmul.mubr.f32.gmra.mxu0 %v870
    %v943 = vpop.f32.mrf.mxu0
    %v944 = vadd.f32 %v863, %v943
    %v945 = vpop.f32.mrf.mxu0
    %946 = vdwg.mxu0
    %947 = vrot.lane.b32.xlu0 %v205, 112
    %v948 = vpop.permute.xlu0 %947
    %949 = vrot.lane.b32.xlu0 %v210, 112
    %v950 = vpop.permute.xlu0 %949
    %951 = vrot.lane.b32.xlu0 %v292, 112
    %v952 = vpop.permute.xlu0 %951
    %953 = vrot.lane.b32.xlu0 %v297, 112
    %v954 = vpop.permute.xlu0 %953
    %v955 = vsel %vm389, %v948, 0
    %v957 = vsel %vm389, %v950, 0
    %v959 = vsel %vm389, %v952, 0
    %v961 = vsel %vm389, %v954, 0
    %963 = vmatprep.subr.mxu0 0.0
    %964 = vmatpush1.xpose.msra.mxu0 0.0
    %965 = vmatprep.subr.mxu0 0.0
    %966 = vmatpush1.xpose.msra.mxu0 0.0
    %967 = vmatprep.subr.mxu0 0.0
    %968 = vmatpush1.xpose.msra.mxu0 0.0
    %969 = vmatprep.subr.mxu0 0.0
    %970 = vmatpush1.xpose.msra.mxu0 0.0
    %971 = vmatprep.subr.mxu0 0.0
    %972 = vmatpush1.xpose.msra.mxu0 0.0
    %973 = vmatprep.subr.mxu0 0.0
    %974 = vmatpush1.xpose.msra.mxu0 0.0
    %975 = vmatprep.subr.mxu0 0.0
    %976 = vmatpush1.xpose.msra.mxu0 0.0
    %977 = vmatprep.subr.mxu0 0.0
    %978 = vmatpush1.xpose.msra.mxu0 0.0
    %979 = vmatprep.subr.mxu0 0.0
    %980 = vmatpush1.xpose.msra.mxu0 0.0
    %981 = vmatprep.subr.mxu0 0.0
    %982 = vmatpush1.xpose.msra.mxu0 0.0
    %983 = vmatprep.subr.mxu0 0.0
    %984 = vmatpush1.xpose.msra.mxu0 0.0
    %985 = vmatprep.subr.mxu0 0.0
    %986 = vmatpush1.xpose.msra.mxu0 0.0
    %987 = vmatprep.subr.mxu0 0.0
    %988 = vmatpush1.xpose.msra.mxu0 0.0
    %989 = vmatprep.subr.mxu0 0.0
    %990 = vmatpush1.xpose.msra.mxu0 0.0
    %991 = vmatprep.subr.mxu0 0.0
    %992 = vmatpush1.xpose.msra.mxu0 %v961
    %993 = vmatprep.subr.mxu0 0.0
    %994 = vmatpush1.xpose.msra.mxu0 %v959
    %995 = vmatprep.subr.mxu0 0.0
    %996 = vmatpush2.xpose.msra.mxu0 0.0
    %997 = vmatprep.subr.mxu0 0.0
    %998 = vmatpush2.xpose.msra.mxu0 0.0
    %999 = vmatprep.subr.mxu0 0.0
    %1000 = vmatpush2.xpose.msra.mxu0 0.0
    %1001 = vmatprep.subr.mxu0 0.0
    %1002 = vmatpush2.xpose.msra.mxu0 0.0
    %1003 = vmatprep.subr.mxu0 0.0
    %1004 = vmatpush2.xpose.msra.mxu0 0.0
    %1005 = vmatprep.subr.mxu0 0.0
    %1006 = vmatpush2.xpose.msra.mxu0 0.0
    %1007 = vmatprep.subr.mxu0 0.0
    %1008 = vmatpush2.xpose.msra.mxu0 0.0
    %1009 = vmatprep.subr.mxu0 0.0
    %1010 = vmatpush2.xpose.msra.mxu0 0.0
    %1011 = vmatprep.subr.mxu0 0.0
    %1012 = vmatpush2.xpose.msra.mxu0 0.0
    %1013 = vmatprep.subr.mxu0 0.0
    %1014 = vmatpush2.xpose.msra.mxu0 0.0
    %1015 = vmatprep.subr.mxu0 0.0
    %1016 = vmatpush2.xpose.msra.mxu0 0.0
    %1017 = vmatprep.subr.mxu0 0.0
    %1018 = vmatpush2.xpose.msra.mxu0 0.0
    %1019 = vmatprep.subr.mxu0 0.0
    %1020 = vmatpush2.xpose.msra.mxu0 0.0
    %1021 = vmatprep.subr.mxu0 0.0
    %1022 = vmatpush2.xpose.msra.mxu0 0.0
    %1023 = vmatprep.subr.mxu0 0.0
    %1024 = vmatpush2.xpose.msra.mxu0 0.0
    %1025 = vmatprep.subr.mxu0 0.0
    %1026 = vmatpush2.xpose.msra.mxu0 0.0
    %1027 = vmatprep.mubr.f32.mxu0 0.0
    %1028 = vmatmul.mubr.f32.gmra.mxu0 %v955
    %v1029 = vpop.f32.mrf.mxu0
    %v1030 = vadd.f32 %v387, %v1029
    %v1031 = vpop.f32.mrf.mxu0
    %1032 = vmatprep.mubr.f32.mxu0 0.0
    %1033 = vmatmul.mubr.f32.gmra.mxu0 %v957
    %v1034 = vpop.f32.mrf.mxu0
    %v1035 = vadd.f32 %v388, %v1034
    %v1036 = vpop.f32.mrf.mxu0
    %1037 = vdwg.mxu0
    %v1038 = vsel %vm477, %v1030, -inf
    %1039 = vmax.xlane.f32.xlu0 %v1038
    %v1040 = vpop.xlane.xlu0 %1039
    %v1041 = vsel %vm477, %v1035, -inf
    %1042 = vmax.xlane.f32.xlu0 %v1041
    %v1043 = vpop.xlane.xlu0 %1042
    %v1044 = vsub.f32 %v1030, %v1040
    %v1045 = vsub.f32 %v1035, %v1043
    %v1046 = vmul.f32 %v1044, 1.442695
    %v1047 = vpow.pop %v1046
    %v1048 = vmul.f32 %v1045, 1.442695
    %v1049 = vpow.pop %v1048
    %v1050 = vsel %vm477, %v1047, 0.0
    %1051 = vadd.xlane.f32.xlu0 %v1050
    %v1052 = vpop.xlane.xlu0 %1051
    %v1053 = vsel %vm477, %v1049, 0.0
    %1054 = vadd.xlane.f32.xlu0 %v1053
    %v1055 = vpop.xlane.xlu0 %1054
    %1056 = vrot.lane.b32.xlu0 %v379, 112
    %v1057 = vpop.permute.xlu0 %1056
    %1058 = vrot.lane.b32.xlu0 %v384, 112
    %v1059 = vpop.permute.xlu0 %1058
    %v1063 = vsel %vm477, %v1047, 0
    %v1066 = vsel %vm477, %v1049, 0
    %1068 = vmatprep.subr.mxu0 0.0
    %1069 = vmatpush1.msra.mxu0 0.0
    %1070 = vmatprep.subr.mxu0 0.0
    %1071 = vmatpush1.msra.mxu0 0.0
    %1072 = vmatprep.subr.mxu0 0.0
    %1073 = vmatpush1.msra.mxu0 0.0
    %1074 = vmatprep.subr.mxu0 0.0
    %1075 = vmatpush1.msra.mxu0 0.0
    %1076 = vmatprep.subr.mxu0 0.0
    %1077 = vmatpush1.msra.mxu0 0.0
    %1078 = vmatprep.subr.mxu0 0.0
    %1079 = vmatpush1.msra.mxu0 0.0
    %1080 = vmatprep.subr.mxu0 0.0
    %1081 = vmatpush1.msra.mxu0 0.0
    %1082 = vmatprep.subr.mxu0 0.0
    %1083 = vmatpush1.msra.mxu0 0.0
    %1084 = vmatprep.subr.mxu0 0.0
    %1085 = vmatpush1.msra.mxu0 0.0
    %1086 = vmatprep.subr.mxu0 0.0
    %1087 = vmatpush1.msra.mxu0 0.0
    %1088 = vmatprep.subr.mxu0 0.0
    %1089 = vmatpush1.msra.mxu0 0.0
    %1090 = vmatprep.subr.mxu0 0.0
    %1091 = vmatpush1.msra.mxu0 0.0
    %1092 = vmatprep.subr.mxu0 0.0
    %1093 = vmatpush1.msra.mxu0 0.0
    %1094 = vmatprep.subr.mxu0 0.0
    %1095 = vmatpush1.msra.mxu0 0.0
    %1096 = vmatprep.subr.mxu0 0.0
    %1097 = vmatpush1.msra.mxu0 %v1059
    %1098 = vmatprep.subr.mxu0 0.0
    %1099 = vmatpush1.msra.mxu0 %v1057
    %1100 = vmatprep.subr.mxu0 0.0
    %1101 = vmatpush2.msra.mxu0 0.0
    %1102 = vmatprep.subr.mxu0 0.0
    %1103 = vmatpush2.msra.mxu0 0.0
    %1104 = vmatprep.subr.mxu0 0.0
    %1105 = vmatpush2.msra.mxu0 0.0
    %1106 = vmatprep.subr.mxu0 0.0
    %1107 = vmatpush2.msra.mxu0 0.0
    %1108 = vmatprep.subr.mxu0 0.0
    %1109 = vmatpush2.msra.mxu0 0.0
    %1110 = vmatprep.subr.mxu0 0.0
    %1111 = vmatpush2.msra.mxu0 0.0
    %1112 = vmatprep.subr.mxu0 0.0
    %1113 = vmatpush2.msra.mxu0 0.0
    %1114 = vmatprep.subr.mxu0 0.0
    %1115 = vmatpush2.msra.mxu0 0.0
    %1116 = vmatprep.subr.mxu0 0.0
    %1117 = vmatpush2.msra.mxu0 0.0
    %1118 = vmatprep.subr.mxu0 0.0
    %1119 = vmatpush2.msra.mxu0 0.0
    %1120 = vmatprep.subr.mxu0 0.0
    %1121 = vmatpush2.msra.mxu0 0.0
    %1122 = vmatprep.subr.mxu0 0.0
    %1123 = vmatpush2.msra.mxu0 0.0
    %1124 = vmatprep.subr.mxu0 0.0
    %1125 = vmatpush2.msra.mxu0 0.0
    %1126 = vmatprep.subr.mxu0 0.0
    %1127 = vmatpush2.msra.mxu0 0.0
    %1128 = vmatprep.subr.mxu0 0.0
    %1129 = vmatpush2.msra.mxu0 0.0
    %1130 = vmatprep.subr.mxu0 0.0
    %1131 = vmatpush2.msra.mxu0 0.0
    %1132 = vmatprep.mubr.f32.mxu0 0.0
    %1133 = vmatmul.mubr.f32.gmra.mxu0 %v1063
    %v1134 = vpop.f32.mrf.mxu0
    %v1135 = vadd.f32 0.0, %v1134
    %v1136 = vpop.f32.mrf.mxu0
    %1137 = vmatprep.mubr.f32.mxu0 0.0
    %1138 = vmatmul.mubr.f32.gmra.mxu0 %v1066
    %v1139 = vpop.f32.mrf.mxu0
    %v1140 = vadd.f32 0.0, %v1139
    %v1141 = vpop.f32.mrf.mxu0
    %1142 = vdwg.mxu0
    %v1143 = vrcp.pop %v1052
    %v1144 = vmul.f32 %v1135, %v1143
    %v1145 = vrcp.pop %v1055
    %v1146 = vmul.f32 %v1140, %v1145
    %v1147 = vld [vmem:[#allocation13 + $0x10] sm:$0xff]
    %v1149 = vsel %vm389, %v1144, 0
    %v1152 = vsel %vm389, %v1146, 0
    %1154 = vmatprep.subr.mxu0 0.0
    %1155 = vmatpush1.msra.mxu0 0.0
    %1156 = vmatprep.subr.mxu0 0.0
    %1157 = vmatpush1.msra.mxu0 0.0
    %1158 = vmatprep.subr.mxu0 0.0
    %1159 = vmatpush1.msra.mxu0 0.0
    %1160 = vmatprep.subr.mxu0 0.0
    %1161 = vmatpush1.msra.mxu0 0.0
    %1162 = vmatprep.subr.mxu0 0.0
    %1163 = vmatpush1.msra.mxu0 0.0
    %1164 = vmatprep.subr.mxu0 0.0
    %1165 = vmatpush1.msra.mxu0 0.0
    %1166 = vmatprep.subr.mxu0 0.0
    %1167 = vmatpush1.msra.mxu0 0.0
    %1168 = vmatprep.subr.mxu0 0.0
    %1169 = vmatpush1.msra.mxu0 0.0
    %1170 = vmatprep.subr.mxu0 0.0
    %1171 = vmatpush1.msra.mxu0 0.0
    %1172 = vmatprep.subr.mxu0 0.0
    %1173 = vmatpush1.msra.mxu0 0.0
    %1174 = vmatprep.subr.mxu0 0.0
    %1175 = vmatpush1.msra.mxu0 0.0
    %1176 = vmatprep.subr.mxu0 0.0
    %1177 = vmatpush1.msra.mxu0 0.0
    %1178 = vmatprep.subr.mxu0 0.0
    %1179 = vmatpush1.msra.mxu0 0.0
    %1180 = vmatprep.subr.mxu0 0.0
    %1181 = vmatpush1.msra.mxu0 0.0
    %1182 = vmatprep.subr.mxu0 0.0
    %1183 = vmatpush1.msra.mxu0 0.0
    %1184 = vmatprep.subr.mxu0 0.0
    %1185 = vmatpush1.msra.mxu0 %v1147
    %1186 = vmatprep.subr.mxu0 0.0
    %1187 = vmatpush2.msra.mxu0 0.0
    %1188 = vmatprep.subr.mxu0 0.0
    %1189 = vmatpush2.msra.mxu0 0.0
    %1190 = vmatprep.subr.mxu0 0.0
    %1191 = vmatpush2.msra.mxu0 0.0
    %1192 = vmatprep.subr.mxu0 0.0
    %1193 = vmatpush2.msra.mxu0 0.0
    %1194 = vmatprep.subr.mxu0 0.0
    %1195 = vmatpush2.msra.mxu0 0.0
    %1196 = vmatprep.subr.mxu0 0.0
    %1197 = vmatpush2.msra.mxu0 0.0
    %1198 = vmatprep.subr.mxu0 0.0
    %1199 = vmatpush2.msra.mxu0 0.0
    %1200 = vmatprep.subr.mxu0 0.0
    %1201 = vmatpush2.msra.mxu0 0.0
    %1202 = vmatprep.subr.mxu0 0.0
    %1203 = vmatpush2.msra.mxu0 0.0
    %1204 = vmatprep.subr.mxu0 0.0
    %1205 = vmatpush2.msra.mxu0 0.0
    %1206 = vmatprep.subr.mxu0 0.0
    %1207 = vmatpush2.msra.mxu0 0.0
    %1208 = vmatprep.subr.mxu0 0.0
    %1209 = vmatpush2.msra.mxu0 0.0
    %1210 = vmatprep.subr.mxu0 0.0
    %1211 = vmatpush2.msra.mxu0 0.0
    %1212 = vmatprep.subr.mxu0 0.0
    %1213 = vmatpush2.msra.mxu0 0.0
    %1214 = vmatprep.subr.mxu0 0.0
    %1215 = vmatpush2.msra.mxu0 0.0
    %1216 = vmatprep.subr.mxu0 0.0
    %1217 = vmatpush2.msra.mxu0 0.0
    %1218 = vmatprep.mubr.f32.mxu0 0.0
    %1219 = vmatmul.mubr.f32.gmra.mxu0 %v1149
    %v1220 = vpop.f32.mrf.mxu0
    %v1221 = vadd.f32 0.0, %v1220
    %v1222 = vpop.f32.mrf.mxu0
    %1223 = vmatprep.mubr.f32.mxu0 0.0
    %1224 = vmatmul.mubr.f32.gmra.mxu0 %v1152
    %v1225 = vpop.f32.mrf.mxu0
    %v1226 = vadd.f32 0.0, %v1225
    %v1227 = vpop.f32.mrf.mxu0
    %1228 = vdwg.mxu0
    %v1229 = vadd.f32 %v939, %v1221
    %v1230 = vadd.f32 %v944, %v1226
    %1231 = vrot.lane.b32.xlu0 %v205, 104
    %v1232 = vpop.permute.xlu0 %1231
    %1233 = vrot.lane.b32.xlu0 %v210, 104
    %v1234 = vpop.permute.xlu0 %1233
    %1235 = vrot.lane.b32.xlu0 %v292, 104
    %v1236 = vpop.permute.xlu0 %1235
    %1237 = vrot.lane.b32.xlu0 %v297, 104
    %v1238 = vpop.permute.xlu0 %1237
    %v1239 = vsel %vm389, %v1232, 0
    %v1241 = vsel %vm389, %v1234, 0
    %v1243 = vsel %vm389, %v1236, 0
    %v1245 = vsel %vm389, %v1238, 0
    %1247 = vmatprep.subr.mxu0 0.0
    %1248 = vmatpush1.xpose.msra.mxu0 0.0
    %1249 = vmatprep.subr.mxu0 0.0
    %1250 = vmatpush1.xpose.msra.mxu0 0.0
    %1251 = vmatprep.subr.mxu0 0.0
    %1252 = vmatpush1.xpose.msra.mxu0 0.0
    %1253 = vmatprep.subr.mxu0 0.0
    %1254 = vmatpush1.xpose.msra.mxu0 0.0
    %1255 = vmatprep.subr.mxu0 0.0
    %1256 = vmatpush1.xpose.msra.mxu0 0.0
    %1257 = vmatprep.subr.mxu0 0.0
    %1258 = vmatpush1.xpose.msra.mxu0 0.0
    %1259 = vmatprep.subr.mxu0 0.0
    %1260 = vmatpush1.xpose.msra.mxu0 0.0
    %1261 = vmatprep.subr.mxu0 0.0
    %1262 = vmatpush1.xpose.msra.mxu0 0.0
    %1263 = vmatprep.subr.mxu0 0.0
    %1264 = vmatpush1.xpose.msra.mxu0 0.0
    %1265 = vmatprep.subr.mxu0 0.0
    %1266 = vmatpush1.xpose.msra.mxu0 0.0
    %1267 = vmatprep.subr.mxu0 0.0
    %1268 = vmatpush1.xpose.msra.mxu0 0.0
    %1269 = vmatprep.subr.mxu0 0.0
    %1270 = vmatpush1.xpose.msra.mxu0 0.0
    %1271 = vmatprep.subr.mxu0 0.0
    %1272 = vmatpush1.xpose.msra.mxu0 0.0
    %1273 = vmatprep.subr.mxu0 0.0
    %1274 = vmatpush1.xpose.msra.mxu0 0.0
    %1275 = vmatprep.subr.mxu0 0.0
    %1276 = vmatpush1.xpose.msra.mxu0 %v1245
    %1277 = vmatprep.subr.mxu0 0.0
    %1278 = vmatpush1.xpose.msra.mxu0 %v1243
    %1279 = vmatprep.subr.mxu0 0.0
    %1280 = vmatpush2.xpose.msra.mxu0 0.0
    %1281 = vmatprep.subr.mxu0 0.0
    %1282 = vmatpush2.xpose.msra.mxu0 0.0
    %1283 = vmatprep.subr.mxu0 0.0
    %1284 = vmatpush2.xpose.msra.mxu0 0.0
    %1285 = vmatprep.subr.mxu0 0.0
    %1286 = vmatpush2.xpose.msra.mxu0 0.0
    %1287 = vmatprep.subr.mxu0 0.0
    %1288 = vmatpush2.xpose.msra.mxu0 0.0
    %1289 = vmatprep.subr.mxu0 0.0
    %1290 = vmatpush2.xpose.msra.mxu0 0.0
    %1291 = vmatprep.subr.mxu0 0.0
    %1292 = vmatpush2.xpose.msra.mxu0 0.0
    %1293 = vmatprep.subr.mxu0 0.0
    %1294 = vmatpush2.xpose.msra.mxu0 0.0
    %1295 = vmatprep.subr.mxu0 0.0
    %1296 = vmatpush2.xpose.msra.mxu0 0.0
    %1297 = vmatprep.subr.mxu0 0.0
    %1298 = vmatpush2.xpose.msra.mxu0 0.0
    %1299 = vmatprep.subr.mxu0 0.0
    %1300 = vmatpush2.xpose.msra.mxu0 0.0
    %1301 = vmatprep.subr.mxu0 0.0
    %1302 = vmatpush2.xpose.msra.mxu0 0.0
    %1303 = vmatprep.subr.mxu0 0.0
    %1304 = vmatpush2.xpose.msra.mxu0 0.0
    %1305 = vmatprep.subr.mxu0 0.0
    %1306 = vmatpush2.xpose.msra.mxu0 0.0
    %1307 = vmatprep.subr.mxu0 0.0
    %1308 = vmatpush2.xpose.msra.mxu0 0.0
    %1309 = vmatprep.subr.mxu0 0.0
    %1310 = vmatpush2.xpose.msra.mxu0 0.0
    %1311 = vmatprep.mubr.f32.mxu0 0.0
    %1312 = vmatmul.mubr.f32.gmra.mxu0 %v1239
    %v1313 = vpop.f32.mrf.mxu0
    %v1314 = vadd.f32 %v387, %v1313
    %v1315 = vpop.f32.mrf.mxu0
    %1316 = vmatprep.mubr.f32.mxu0 0.0
    %1317 = vmatmul.mubr.f32.gmra.mxu0 %v1241
    %v1318 = vpop.f32.mrf.mxu0
    %v1319 = vadd.f32 %v388, %v1318
    %v1320 = vpop.f32.mrf.mxu0
    %1321 = vdwg.mxu0
    %v1322 = vsel %vm477, %v1314, -inf
    %1323 = vmax.xlane.f32.xlu0 %v1322
    %v1324 = vpop.xlane.xlu0 %1323
    %v1325 = vsel %vm477, %v1319, -inf
    %1326 = vmax.xlane.f32.xlu0 %v1325
    %v1327 = vpop.xlane.xlu0 %1326
    %v1328 = vsub.f32 %v1314, %v1324
    %v1329 = vsub.f32 %v1319, %v1327
    %v1330 = vmul.f32 %v1328, 1.442695
    %v1331 = vpow.pop %v1330
    %v1332 = vmul.f32 %v1329, 1.442695
    %v1333 = vpow.pop %v1332
    %v1334 = vsel %vm477, %v1331, 0.0
    %1335 = vadd.xlane.f32.xlu0 %v1334
    %v1336 = vpop.xlane.xlu0 %1335
    %v1337 = vsel %vm477, %v1333, 0.0
    %1338 = vadd.xlane.f32.xlu0 %v1337
    %v1339 = vpop.xlane.xlu0 %1338
    %1340 = vrot.lane.b32.xlu0 %v379, 104
    %v1341 = vpop.permute.xlu0 %1340
    %1342 = vrot.lane.b32.xlu0 %v384, 104
    %v1343 = vpop.permute.xlu0 %1342
    %v1347 = vsel %vm477, %v1331, 0
    %v1350 = vsel %vm477, %v1333, 0
    %1352 = vmatprep.subr.mxu0 0.0
    %1353 = vmatpush1.msra.mxu0 0.0
    %1354 = vmatprep.subr.mxu0 0.0
    %1355 = vmatpush1.msra.mxu0 0.0
    %1356 = vmatprep.subr.mxu0 0.0
    %1357 = vmatpush1.msra.mxu0 0.0
    %1358 = vmatprep.subr.mxu0 0.0
    %1359 = vmatpush1.msra.mxu0 0.0
    %1360 = vmatprep.subr.mxu0 0.0
    %1361 = vmatpush1.msra.mxu0 0.0
    %1362 = vmatprep.subr.mxu0 0.0
    %1363 = vmatpush1.msra.mxu0 0.0
    %1364 = vmatprep.subr.mxu0 0.0
    %1365 = vmatpush1.msra.mxu0 0.0
    %1366 = vmatprep.subr.mxu0 0.0
    %1367 = vmatpush1.msra.mxu0 0.0
    %1368 = vmatprep.subr.mxu0 0.0
    %1369 = vmatpush1.msra.mxu0 0.0
    %1370 = vmatprep.subr.mxu0 0.0
    %1371 = vmatpush1.msra.mxu0 0.0
    %1372 = vmatprep.subr.mxu0 0.0
    %1373 = vmatpush1.msra.mxu0 0.0
    %1374 = vmatprep.subr.mxu0 0.0
    %1375 = vmatpush1.msra.mxu0 0.0
    %1376 = vmatprep.subr.mxu0 0.0
    %1377 = vmatpush1.msra.mxu0 0.0
    %1378 = vmatprep.subr.mxu0 0.0
    %1379 = vmatpush1.msra.mxu0 0.0
    %1380 = vmatprep.subr.mxu0 0.0
    %1381 = vmatpush1.msra.mxu0 %v1343
    %1382 = vmatprep.subr.mxu0 0.0
    %1383 = vmatpush1.msra.mxu0 %v1341
    %1384 = vmatprep.subr.mxu0 0.0
    %1385 = vmatpush2.msra.mxu0 0.0
    %1386 = vmatprep.subr.mxu0 0.0
    %1387 = vmatpush2.msra.mxu0 0.0
    %1388 = vmatprep.subr.mxu0 0.0
    %1389 = vmatpush2.msra.mxu0 0.0
    %1390 = vmatprep.subr.mxu0 0.0
    %1391 = vmatpush2.msra.mxu0 0.0
    %1392 = vmatprep.subr.mxu0 0.0
    %1393 = vmatpush2.msra.mxu0 0.0
    %1394 = vmatprep.subr.mxu0 0.0
    %1395 = vmatpush2.msra.mxu0 0.0
    %1396 = vmatprep.subr.mxu0 0.0
    %1397 = vmatpush2.msra.mxu0 0.0
    %1398 = vmatprep.subr.mxu0 0.0
    %1399 = vmatpush2.msra.mxu0 0.0
    %1400 = vmatprep.subr.mxu0 0.0
    %1401 = vmatpush2.msra.mxu0 0.0
    %1402 = vmatprep.subr.mxu0 0.0
    %1403 = vmatpush2.msra.mxu0 0.0
    %1404 = vmatprep.subr.mxu0 0.0
    %1405 = vmatpush2.msra.mxu0 0.0
    %1406 = vmatprep.subr.mxu0 0.0
    %1407 = vmatpush2.msra.mxu0 0.0
    %1408 = vmatprep.subr.mxu0 0.0
    %1409 = vmatpush2.msra.mxu0 0.0
    %1410 = vmatprep.subr.mxu0 0.0
    %1411 = vmatpush2.msra.mxu0 0.0
    %1412 = vmatprep.subr.mxu0 0.0
    %1413 = vmatpush2.msra.mxu0 0.0
    %1414 = vmatprep.subr.mxu0 0.0
    %1415 = vmatpush2.msra.mxu0 0.0
    %1416 = vmatprep.mubr.f32.mxu0 0.0
    %1417 = vmatmul.mubr.f32.gmra.mxu0 %v1347
    %v1418 = vpop.f32.mrf.mxu0
    %v1419 = vadd.f32 0.0, %v1418
    %v1420 = vpop.f32.mrf.mxu0
    %1421 = vmatprep.mubr.f32.mxu0 0.0
    %1422 = vmatmul.mubr.f32.gmra.mxu0 %v1350
    %v1423 = vpop.f32.mrf.mxu0
    %v1424 = vadd.f32 0.0, %v1423
    %v1425 = vpop.f32.mrf.mxu0
    %1426 = vdwg.mxu0
    %v1427 = vrcp.pop %v1336
    %v1428 = vmul.f32 %v1419, %v1427
    %v1429 = vrcp.pop %v1339
    %v1430 = vmul.f32 %v1424, %v1429
    %v1431 = vld [vmem:[#allocation13 + $0x18] sm:$0xff]
    %v1433 = vsel %vm389, %v1428, 0
    %v1436 = vsel %vm389, %v1430, 0
    %1438 = vmatprep.subr.mxu0 0.0
    %1439 = vmatpush1.msra.mxu0 0.0
    %1440 = vmatprep.subr.mxu0 0.0
    %1441 = vmatpush1.msra.mxu0 0.0
    %1442 = vmatprep.subr.mxu0 0.0
    %1443 = vmatpush1.msra.mxu0 0.0
    %1444 = vmatprep.subr.mxu0 0.0
    %1445 = vmatpush1.msra.mxu0 0.0
    %1446 = vmatprep.subr.mxu0 0.0
    %1447 = vmatpush1.msra.mxu0 0.0
    %1448 = vmatprep.subr.mxu0 0.0
    %1449 = vmatpush1.msra.mxu0 0.0
    %1450 = vmatprep.subr.mxu0 0.0
    %1451 = vmatpush1.msra.mxu0 0.0
    %1452 = vmatprep.subr.mxu0 0.0
    %1453 = vmatpush1.msra.mxu0 0.0
    %1454 = vmatprep.subr.mxu0 0.0
    %1455 = vmatpush1.msra.mxu0 0.0
    %1456 = vmatprep.subr.mxu0 0.0
    %1457 = vmatpush1.msra.mxu0 0.0
    %1458 = vmatprep.subr.mxu0 0.0
    %1459 = vmatpush1.msra.mxu0 0.0
    %1460 = vmatprep.subr.mxu0 0.0
    %1461 = vmatpush1.msra.mxu0 0.0
    %1462 = vmatprep.subr.mxu0 0.0
    %1463 = vmatpush1.msra.mxu0 0.0
    %1464 = vmatprep.subr.mxu0 0.0
    %1465 = vmatpush1.msra.mxu0 0.0
    %1466 = vmatprep.subr.mxu0 0.0
    %1467 = vmatpush1.msra.mxu0 0.0
    %1468 = vmatprep.subr.mxu0 0.0
    %1469 = vmatpush1.msra.mxu0 %v1431
    %1470 = vmatprep.subr.mxu0 0.0
    %1471 = vmatpush2.msra.mxu0 0.0
    %1472 = vmatprep.subr.mxu0 0.0
    %1473 = vmatpush2.msra.mxu0 0.0
    %1474 = vmatprep.subr.mxu0 0.0
    %1475 = vmatpush2.msra.mxu0 0.0
    %1476 = vmatprep.subr.mxu0 0.0
    %1477 = vmatpush2.msra.mxu0 0.0
    %1478 = vmatprep.subr.mxu0 0.0
    %1479 = vmatpush2.msra.mxu0 0.0
    %1480 = vmatprep.subr.mxu0 0.0
    %1481 = vmatpush2.msra.mxu0 0.0
    %1482 = vmatprep.subr.mxu0 0.0
    %1483 = vmatpush2.msra.mxu0 0.0
    %1484 = vmatprep.subr.mxu0 0.0
    %1485 = vmatpush2.msra.mxu0 0.0
    %1486 = vmatprep.subr.mxu0 0.0
    %1487 = vmatpush2.msra.mxu0 0.0
    %1488 = vmatprep.subr.mxu0 0.0
    %1489 = vmatpush2.msra.mxu0 0.0
    %1490 = vmatprep.subr.mxu0 0.0
    %1491 = vmatpush2.msra.mxu0 0.0
    %1492 = vmatprep.subr.mxu0 0.0
    %1493 = vmatpush2.msra.mxu0 0.0
    %1494 = vmatprep.subr.mxu0 0.0
    %1495 = vmatpush2.msra.mxu0 0.0
    %1496 = vmatprep.subr.mxu0 0.0
    %1497 = vmatpush2.msra.mxu0 0.0
    %1498 = vmatprep.subr.mxu0 0.0
    %1499 = vmatpush2.msra.mxu0 0.0
    %1500 = vmatprep.subr.mxu0 0.0
    %1501 = vmatpush2.msra.mxu0 0.0
    %1502 = vmatprep.mubr.f32.mxu0 0.0
    %1503 = vmatmul.mubr.f32.gmra.mxu0 %v1433
    %v1504 = vpop.f32.mrf.mxu0
    %v1505 = vadd.f32 0.0, %v1504
    %v1506 = vpop.f32.mrf.mxu0
    %1507 = vmatprep.mubr.f32.mxu0 0.0
    %1508 = vmatmul.mubr.f32.gmra.mxu0 %v1436
    %v1509 = vpop.f32.mrf.mxu0
    %v1510 = vadd.f32 0.0, %v1509
    %v1511 = vpop.f32.mrf.mxu0
    %1512 = vdwg.mxu0
    %v1513 = vadd.f32 %v1229, %v1505
    %v1514 = vadd.f32 %v1230, %v1510
    %1515 = vst.msk [vmem:[#allocation14] sm:$0xff] %vm131, %v1513
    %1516 = vst.msk [vmem:[#allocation14 + $0x8] sm:$0xff] %vm131, %v1514
    // Predicated region
    $region62: #{multi_head_attention.1} parent=1 // pred_check
      _
    $region63: #{multi_head_attention.1} parent=1 // pred_check_branch
      %1518 = sbr.rel (0) target = $region65
    $region64: #{multi_head_attention.1} parent=1 // pred_region
      %s1520 = ssub.s32 256, 256
      %1521 = vsyncadd [#allocation4], %s1520
      %s1522 = sshll.u32 [#allocation14], 4
      %s1523 = int_to_ptr.vmem [resolvable:$true] %s1522
      %1528 = dma.vmem_to_hbm [thread:$0]  %s1523, 256, %s8, [#allocation4], 128, 128, 8
    $region65: #{multi_head_attention.1} parent=1 // pred_fallthru
      _
    // Predicated region
    $region66: #{multi_head_attention.1} parent=1 // pred_check
      _
    $region67: #{multi_head_attention.1} parent=1 // pred_check_branch
      %1530 = sbr.rel (0) target = $region69
    $region68: #{multi_head_attention.1} parent=1 // pred_region
      %1531 = dma.done [#allocation4], 256
    $region69: #{multi_head_attention.1} parent=1 // pred_fallthru
      _
    %1532 = vsyncpa [#allocation3], 1
    %1533 = vsyncpa [#allocation6], 1
    %1534 = vsyncpa [#allocation9], 1
    %1535 = vsyncpa [#allocation12], 1
    %1536 = vsyncpa [#allocation4], 1

</llo_original>
